<compile_context>
chip_gen: v5e
topology: v5e:2x2
jax: 0.10.0
libtpu: 0.0.40
codegen_flags: <defaults>
</compile_context>

<pallas_src>
import numpy as np
import jax
import jax.numpy as jnp
from jax.experimental import pallas as pl
from jax.experimental.pallas import tpu as pltpu


# ----------------------------------------------------------------------------
# Parameter construction (PyTorch-layout weights) and host-side preparation.
# ----------------------------------------------------------------------------
def init_params(key, in_ch, out_ch):
    """Deterministic synthetic parameters matching the PyTorch module's shapes."""
    mid = out_ch * 2
    ks = jax.random.split(key, 18)

    def rnd(k, shape, scale=0.1):
        return scale * jax.random.normal(k, shape, jnp.float32)

    return {
        # Conv2d(in_ch -> mid), OIHW
        "w1_oihw": rnd(ks[0], (mid, in_ch, 3, 3)),
        "b1": rnd(ks[1], (mid,)),
        "g1": 1.0 + rnd(ks[2], (mid,)),
        "beta1": rnd(ks[3], (mid,)),
        "m1": rnd(ks[4], (mid,)),
        "v1": 1.0 + 0.3 * jax.random.uniform(ks[5], (mid,), jnp.float32),
        # Conv2d(mid -> mid), OIHW
        "w2_oihw": rnd(ks[6], (mid, mid, 3, 3)),
        "b2": rnd(ks[7], (mid,)),
        "g2": 1.0 + rnd(ks[8], (mid,)),
        "beta2": rnd(ks[9], (mid,)),
        "m2": rnd(ks[10], (mid,)),
        "v2": 1.0 + 0.3 * jax.random.uniform(ks[11], (mid,), jnp.float32),
        # ConvTranspose2d(mid -> out_ch), IOHW
        "w3_iohw": rnd(ks[12], (mid, out_ch, 3, 3)),
        "b3": rnd(ks[13], (out_ch,)),
        "g3": 1.0 + rnd(ks[14], (out_ch,)),
        "beta3": rnd(ks[15], (out_ch,)),
        "m3": rnd(ks[16], (out_ch,)),
        "v3": 1.0 + 0.3 * jax.random.uniform(ks[17], (out_ch,), jnp.float32),
    }


def prepare_params(raw, eps=1e-5):
    """Fold BatchNorm (inference mode) into the conv weights and build the GEMM-ready
    weight matrices (bf16) used by the fused kernel."""
    w1, w2, w3 = raw["w1_oihw"], raw["w2_oihw"], raw["w3_iohw"]
    mid, in_ch = w1.shape[0], w1.shape[1]
    out_ch = w3.shape[1]
    cin_pad = ((in_ch + 7) // 8) * 8          # pad input channels to a sublane multiple

    s1 = raw["g1"] * jax.lax.rsqrt(raw["v1"] + eps)
    s2 = raw["g2"] * jax.lax.rsqrt(raw["v2"] + eps)
    s3 = raw["g3"] * jax.lax.rsqrt(raw["v3"] + eps)

    # conv1: (mid, 9*cin_pad), K ordered as (kh, kw, ci); BN scale folded per out-channel.
    w1p = jnp.pad(w1, ((0, 0), (0, cin_pad - in_ch), (0, 0), (0, 0)))
    w1m = (w1p * s1[:, None, None, None]).transpose(0, 2, 3, 1).reshape(mid, 9 * cin_pad)
    b1f = ((raw["b1"] - raw["m1"]) * s1 + raw["beta1"]).reshape(mid, 1)

    # conv2: (mid, 9*mid)
    w2m = (w2 * s2[:, None, None, None]).transpose(0, 2, 3, 1).reshape(mid, 9 * mid)
    b2f = ((raw["b2"] - raw["m2"]) * s2 + raw["beta2"]).reshape(mid, 1)

    # Transposed conv, 4-phase sub-pixel decomposition (stride 2, pad 1, output_pad 1):
    #   out[o, 2m+pi, 2n+pj] = sum over the tap subset below, input taken at
    #   p00=(m,n), p01=(m,n+1), p10=(m+1,n), p11=(m+1,n+1)  (zero outside the image).
    # All four phases fused into one GEMM with a block-zero weight, output rows ordered
    # [ee, eo, oe, oo] and K blocks ordered [p00, p01, p10, p11].
    def t(kh, kw):                       # (out_ch, mid) slice of the IOHW weight
        return w3[:, :, kh, kw].T

    z = jnp.zeros((out_ch, mid), jnp.float32)
    w_up = jnp.concatenate(
        [
            jnp.concatenate([t(1, 1), z,       z,       z      ], axis=1),  # even row, even col
            jnp.concatenate([t(1, 2), t(1, 0), z,       z      ], axis=1),  # even row, odd  col
            jnp.concatenate([t(2, 1), z,       t(0, 1), z      ], axis=1),  # odd  row, even col
            jnp.concatenate([t(2, 2), t(2, 0), t(0, 2), t(0, 0)], axis=1),  # odd  row, odd  col
        ],
        axis=0,
    )                                                   # (4*out_ch, 4*mid)
    w_up = w_up * jnp.tile(s3, 4)[:, None]
    b_up = jnp.tile((raw["b3"] - raw["m3"]) * s3 + raw["beta3"], 4).reshape(4 * out_ch, 1)

    # bf16 GEMM operands (MXU runs multi-pass for f32; bf16 cuts passes ~3x). Biases stay f32.
    return {
        "w1m": w1m.astype(jnp.bfloat16), "b1f": b1f,
        "w2m": w2m.astype(jnp.bfloat16), "b2f": b2f,
        "w_up": w_up.astype(jnp.bfloat16), "b_up": b_up,
    }


def _boundary_masks(H, W, reps):
    """(9, reps*H*W) f32 masks: mask[(dh+1)*3+(dw+1), g*H*W + h*W + w] = 1 iff (h+dh, w+dw)
    is inside the image.  Compile-time numpy constant; zeros wrapped / out-of-image /
    cross-image lanes after a flat lane roll."""
    hh = np.arange(H)[:, None]
    ww = np.arange(W)[None, :]
    rows = []
    for dh in (-1, 0, 1):
        for dw in (-1, 0, 1):
            ok = (hh + dh >= 0) & (hh + dh < H) & (ww + dw >= 0) & (ww + dw < W)
            rows.append(ok.reshape(1, H * W))
    m = np.concatenate(rows, axis=0).astype(np.float32)
    return np.tile(m, (1, reps))


def _images_per_step(n_images):
    """v7x has two TensorCores per chip: keep >=2 grid steps so both cores get work.
    v5e/v6e have a single TC: fuse the whole batch into the lane axis (one grid step)."""
    try:
        kind = jax.devices()[0].device_kind.lower()
    except Exception:
        kind = ""
    if "v7" in kind and n_images % 2 == 0:
        return n_images // 2
    return n_images


# ----------------------------------------------------------------------------
# Fused forward pass.
# ----------------------------------------------------------------------------
def upsample_layer_forward(params, x_nchw, skip_nchw):
    """x_nchw: (N, in_ch, H, W); skip_nchw: (N, C_skip, 2H, 2W).
    Returns (N, out_ch + C_skip, 2H, 2W) in NCHW, matching torch.cat(dim=1)."""
    # TODO(synk): BatchNorm is folded in inference mode (running stats); training-mode
    # batch statistics are not reproduced.
    w1m, b1f = params["w1m"], params["b1f"]
    w2m, b2f = params["w2m"], params["b2f"]
    w_up, b_up = params["w_up"], params["b_up"]

    N, in_ch, H, W = x_nchw.shape
    HW = H * W
    mid = w1m.shape[0]
    cin_pad = w1m.shape[1] // 9
    out_ch = w_up.shape[0] // 4

    G = _images_per_step(N)            # images fused into the lane axis per grid step
    S = N // G                         # grid steps
    L = G * HW                         # lane extent per step (lane-dense, multiple of 128)

    # Channels-first, lane-dense input view: (S, in_ch, G*HW); lane index = g*HW + h*W + w.
    x = x_nchw.astype(jnp.float32).reshape(S, G, in_ch, HW)
    x = jnp.transpose(x, (0, 2, 1, 3)).reshape(S, in_ch, L)
    masks = jnp.asarray(_boundary_masks(H, W, G), jnp.float32)   # compile-time constant

    def kernel(x_ref, m_ref, w1_ref, b1_ref, w2_ref, b2_ref, wu_ref, bu_ref,
               o_ref, patch_ref):
        def tap(v, dh, dw):
            """Lane (g*HW + h*W + w) holds v[:, g*HW + (h+dh)*W + (w+dw)], 0 outside."""
            s = dh * W + dw
            if s == 0:
                return v
            vv = pltpu.roll(v, shift=(-s) % L, axis=1)     # XLU lane rotate
            idx = (dh + 1) * 3 + (dw + 1)
            return vv * m_ref[idx:idx + 1, :]              # zero wrapped/out-of-image lanes

        def conv3x3(v, C, w, b):
            # im2col patch assembled by sublane-slice stores into the VMEM scratch
            # (no concatenate relayout), then one K=9*C GEMM with bf16 operands.
            t = 0
            for dh in (-1, 0, 1):
                for dw in (-1, 0, 1):
                    patch_ref[pl.ds(t * C, C), :] = tap(v, dh, dw)
                    t += 1
            patch = patch_ref[pl.ds(0, 9 * C), :].astype(jnp.bfloat16)
            acc = jnp.dot(w, patch, preferred_element_type=jnp.float32)
            return jnp.maximum(acc + b, 0.0)               # folded-BN bias + ReLU (f32)

        # Input block + in-kernel zero-pad of the channel axis to the sublane multiple.
        x_f = x_ref[0]                                     # (in_ch, L)
        if cin_pad != in_ch:
            x_f = jnp.concatenate(
                [x_f, jnp.zeros((cin_pad - in_ch, L), jnp.float32)], axis=0)

        h1 = conv3x3(x_f, cin_pad, w1_ref[...], b1_ref[...])   # (mid, L)
        h2 = conv3x3(h1, mid, w2_ref[...], b2_ref[...])        # (mid, L)

        # Transposed conv: 4-phase sub-pixel decomposition fused into one GEMM over
        # [p00; p01; p10; p11]; the patch reuses the first 4*mid rows of the scratch.
        patch_ref[pl.ds(0, mid), :] = h2
        patch_ref[pl.ds(mid, mid), :] = tap(h2, 0, 1)
        patch_ref[pl.ds(2 * mid, mid), :] = tap(h2, 1, 0)
        patch_ref[pl.ds(3 * mid, mid), :] = tap(h2, 1, 1)
        up_patch = patch_ref[pl.ds(0, 4 * mid), :].astype(jnp.bfloat16)
        up = jnp.dot(wu_ref[...], up_patch, preferred_element_type=jnp.float32)
        o_ref[0] = jnp.maximum(up + bu_ref[...], 0.0).astype(o_ref.dtype)

    y = pl.pallas_call(
        kernel,
        out_shape=jax.ShapeDtypeStruct((S, 4 * out_ch, L), jnp.float32),
        grid=(S,),
        in_specs=[
            pl.BlockSpec((1, in_ch, L), lambda s: (s, 0, 0)),
            pl.BlockSpec(masks.shape, lambda s: (0, 0)),
            pl.BlockSpec(w1m.shape, lambda s: (0, 0)),
            pl.BlockSpec(b1f.shape, lambda s: (0, 0)),
            pl.BlockSpec(w2m.shape, lambda s: (0, 0)),
            pl.BlockSpec(b2f.shape, lambda s: (0, 0)),
            pl.BlockSpec(w_up.shape, lambda s: (0, 0)),
            pl.BlockSpec(b_up.shape, lambda s: (0, 0)),
        ],
        out_specs=pl.BlockSpec((1, 4 * out_ch, L), lambda s: (s, 0, 0)),
        scratch_shapes=[pltpu.VMEM((9 * max(cin_pad, mid), L), jnp.float32)],
        compiler_params=pltpu.CompilerParams(dimension_semantics=("parallel",)),
    )(x, masks, w1m, b1f, w2m, b2f, w_up, b_up)

    # Phase-planar (S, [pi, pj, o], G*HW) -> (N, out_ch, 2H, 2W), then channel-concat skip.
    # TODO(synk): the 2x2 sub-pixel interleave and the skip concat remain as two tiny XLA
    # ops; fusing them in-kernel needs stride-2 lane stores / generic lane relayouts with
    # shakier Mosaic lowering, so they are kept outside for robustness.
    y = y.reshape(S, 2, 2, out_ch, G, H, W)                # (s, pi, pj, o, g, h, w)
    y = jnp.transpose(y, (0, 4, 3, 5, 1, 6, 2))            # (s, g, o, h, pi, w, pj)
    x_up = y.reshape(N, out_ch, 2 * H, 2 * W)
    return jnp.concatenate([x_up, skip_nchw.astype(jnp.float32)], axis=1)


# ----------------------------------------------------------------------------
# Pure-JAX/XLA reference (inference-mode BN), used only to verify the kernel.
# ----------------------------------------------------------------------------
def reference_forward(raw, x, skip, eps=1e-5):
    dn = ("NCHW", "OIHW", "NCHW")
    prec = jax.lax.Precision.HIGHEST

    def bn_relu(y, b, g, beta, m, v):
        y = y + b[None, :, None, None]
        y = (y - m[None, :, None, None]) * (g * jax.lax.rsqrt(v + eps))[None, :, None, None]
        return jax.nn.relu(y + beta[None, :, None, None])

    y = jax.lax.conv_general_dilated(x, raw["w1_oihw"], (1, 1), ((1, 1), (1, 1)),
                                     dimension_numbers=dn, precision=prec)
    y = bn_relu(y, raw["b1"], raw["g1"], raw["beta1"], raw["m1"], raw["v1"])
    y = jax.lax.conv_general_dilated(y, raw["w2_oihw"], (1, 1), ((1, 1), (1, 1)),
                                     dimension_numbers=dn, precision=prec)
    y = bn_relu(y, raw["b2"], raw["g2"], raw["beta2"], raw["m2"], raw["v2"])
    # ConvTranspose2d(k=3, s=2, p=1, op=1) == dilate-by-2 + pad (1,2) + conv with
    # spatially flipped, I/O-swapped weights.
    w3_eq = jnp.flip(jnp.transpose(raw["w3_iohw"], (1, 0, 2, 3)), axis=(2, 3))
    y = jax.lax.conv_general_dilated(y, w3_eq, (1, 1), ((1, 2), (1, 2)),
                                     lhs_dilation=(2, 2), dimension_numbers=dn,
                                     precision=prec)
    y = bn_relu(y, raw["b3"], raw["g3"], raw["beta3"], raw["m3"], raw["v3"])
    return jnp.concatenate([y, skip.astype(jnp.float32)], axis=1)


if __name__ == "__main__":
    key = jax.random.PRNGKey(0)
    k_param, k_x, k_skip = jax.random.split(key, 3)

    in_ch, out_ch = 4, 4
    N, H, W = 2, 16, 16

    raw = init_params(k_param, in_ch, out_ch)
    params = prepare_params(raw)

    x = jax.random.normal(k_x, (N, in_ch, H, W), jnp.float32)              # NCHW
    skip = jax.random.normal(k_skip, (N, out_ch, 2 * H, 2 * W), jnp.float32)

    fwd = jax.jit(upsample_layer_forward)
    y = jax.block_until_ready(fwd(params, x, skip))

    assert y.shape == (N, 2 * out_ch, 2 * H, 2 * W), y.shape
    assert bool(jnp.all(jnp.isfinite(y)))

    y_ref = jax.block_until_ready(reference_forward(raw, x, skip))
    max_err = float(jnp.max(jnp.abs(y - y_ref)))
    # bf16 GEMM operands (f32 accumulate): expect O(1e-2) absolute error vs the f32 ref.
    assert max_err < 3e-2, f"kernel mismatch vs reference: max|diff|={max_err}"

    print("KERNEL_OK")
</pallas_src>

<mosaic_0001>
module attributes {stable_mosaic.version = 11 : i64} {
  func.func @kernel(%arg0: i32, %arg1: memref<1x4x512xf32, #tpu.memory_space<vmem>>, %arg2: memref<9x512xf32, #tpu.memory_space<vmem>>, %arg3: memref<8x72xbf16, #tpu.memory_space<vmem>>, %arg4: memref<8x1xf32, #tpu.memory_space<vmem>>, %arg5: memref<8x72xbf16, #tpu.memory_space<vmem>>, %arg6: memref<8x1xf32, #tpu.memory_space<vmem>>, %arg7: memref<16x32xbf16, #tpu.memory_space<vmem>>, %arg8: memref<16x1xf32, #tpu.memory_space<vmem>>, %arg9: memref<1x16x512xf32, #tpu.memory_space<vmem>>, %arg10: memref<72x512xf32, #tpu.memory_space<vmem>>) attributes {dimension_semantics = [#tpu.dimension_semantics<parallel>], iteration_bounds = array<i64: 1>, scalar_prefetch = 0 : i64, scratch_operands = 1 : i64, tpu.core_type = #tpu.core_type<tc>, window_params = [{transform_indices = @transform_0, window_bounds = array<i64: 1, 4, 512>}, {pipeline_mode = #tpu.pipeline_mode<synchronous>, transform_indices = @transform_1, window_bounds = array<i64: 9, 512>}, {pipeline_mode = #tpu.pipeline_mode<synchronous>, transform_indices = @transform_2, window_bounds = array<i64: 8, 72>}, {pipeline_mode = #tpu.pipeline_mode<synchronous>, transform_indices = @transform_3, window_bounds = array<i64: 8, 1>}, {pipeline_mode = #tpu.pipeline_mode<synchronous>, transform_indices = @transform_4, window_bounds = array<i64: 8, 72>}, {pipeline_mode = #tpu.pipeline_mode<synchronous>, transform_indices = @transform_5, window_bounds = array<i64: 8, 1>}, {pipeline_mode = #tpu.pipeline_mode<synchronous>, transform_indices = @transform_6, window_bounds = array<i64: 16, 32>}, {pipeline_mode = #tpu.pipeline_mode<synchronous>, transform_indices = @transform_7, window_bounds = array<i64: 16, 1>}, {transform_indices = @transform_8, window_bounds = array<i64: 1, 16, 512>}]} {
    %c0 = arith.constant 0 : index
    %c0_0 = arith.constant 0 : index
    %c0_1 = arith.constant 0 : index
    %0 = vector.load %arg1[%c0, %c0_0, %c0_1] : memref<1x4x512xf32, #tpu.memory_space<vmem>>, vector<1x4x512xf32>
    %1 = vector.shape_cast %0 : vector<1x4x512xf32> to vector<4x512xf32>
    %cst = arith.constant 0.000000e+00 : f32
    %2 = vector.broadcast %cst : f32 to vector<4x512xf32>
    %3 = tpu.concatenate %1, %2 in 0 : vector<4x512xf32>, vector<4x512xf32> -> vector<8x512xf32>
    %c0_2 = arith.constant 0 : index
    %c0_3 = arith.constant 0 : index
    %4 = vector.load %arg3[%c0_2, %c0_3] : memref<8x72xbf16, #tpu.memory_space<vmem>>, vector<8x72xbf16>
    %c0_4 = arith.constant 0 : index
    %c0_5 = arith.constant 0 : index
    %5 = vector.load %arg4[%c0_4, %c0_5] : memref<8x1xf32, #tpu.memory_space<vmem>>, vector<8x1xf32>
    %c17_i32 = arith.constant 17 : i32
    %6 = tpu.dynamic_rotate %3 by %c17_i32 dim 1 : vector<8x512xf32>, i32 -> vector<8x512xf32>
    %c0_6 = arith.constant 0 : index
    %c0_7 = arith.constant 0 : index
    %7 = vector.load %arg2[%c0_6, %c0_7] : memref<9x512xf32, #tpu.memory_space<vmem>>, vector<1x512xf32>
    %8 = vector.broadcast %7 : vector<1x512xf32> to vector<8x512xf32>
    %9 = arith.mulf %6, %8 : vector<8x512xf32>
    %c0_8 = arith.constant 0 : index
    %c0_9 = arith.constant 0 : index
    %10 = vector.load %arg10[%c0_8, %c0_9] : memref<72x512xf32, #tpu.memory_space<vmem>>, vector<8x512xf32>
    tpu.vector_store %arg10[%c0_8, %c0_9], %9 {strides = array<i32>} : memref<72x512xf32, #tpu.memory_space<vmem>>, vector<8x512xf32>,
    %c16_i32 = arith.constant 16 : i32
    %11 = tpu.dynamic_rotate %3 by %c16_i32 dim 1 : vector<8x512xf32>, i32 -> vector<8x512xf32>
    %c1 = arith.constant 1 : index
    %c0_10 = arith.constant 0 : index
    %12 = vector.load %arg2[%c1, %c0_10] : memref<9x512xf32, #tpu.memory_space<vmem>>, vector<1x512xf32>
    %13 = vector.broadcast %12 : vector<1x512xf32> to vector<8x512xf32>
    %14 = arith.mulf %11, %13 : vector<8x512xf32>
    %c8 = arith.constant 8 : index
    %c0_11 = arith.constant 0 : index
    %15 = vector.load %arg10[%c8, %c0_11] : memref<72x512xf32, #tpu.memory_space<vmem>>, vector<8x512xf32>
    tpu.vector_store %arg10[%c8, %c0_11], %14 {strides = array<i32>} : memref<72x512xf32, #tpu.memory_space<vmem>>, vector<8x512xf32>,
    %c15_i32 = arith.constant 15 : i32
    %16 = tpu.dynamic_rotate %3 by %c15_i32 dim 1 : vector<8x512xf32>, i32 -> vector<8x512xf32>
    %c2 = arith.constant 2 : index
    %c0_12 = arith.constant 0 : index
    %17 = vector.load %arg2[%c2, %c0_12] : memref<9x512xf32, #tpu.memory_space<vmem>>, vector<1x512xf32>
    %18 = vector.broadcast %17 : vector<1x512xf32> to vector<8x512xf32>
    %19 = arith.mulf %16, %18 : vector<8x512xf32>
    %c16 = arith.constant 16 : index
    %c0_13 = arith.constant 0 : index
    %20 = vector.load %arg10[%c16, %c0_13] : memref<72x512xf32, #tpu.memory_space<vmem>>, vector<8x512xf32>
    tpu.vector_store %arg10[%c16, %c0_13], %19 {strides = array<i32>} : memref<72x512xf32, #tpu.memory_space<vmem>>, vector<8x512xf32>,
    %c1_i32 = arith.constant 1 : i32
    %21 = tpu.dynamic_rotate %3 by %c1_i32 dim 1 : vector<8x512xf32>, i32 -> vector<8x512xf32>
    %c3 = arith.constant 3 : index
    %c0_14 = arith.constant 0 : index
    %22 = vector.load %arg2[%c3, %c0_14] : memref<9x512xf32, #tpu.memory_space<vmem>>, vector<1x512xf32>
    %23 = vector.broadcast %22 : vector<1x512xf32> to vector<8x512xf32>
    %24 = arith.mulf %21, %23 : vector<8x512xf32>
    %c24 = arith.constant 24 : index
    %c0_15 = arith.constant 0 : index
    %25 = vector.load %arg10[%c24, %c0_15] : memref<72x512xf32, #tpu.memory_space<vmem>>, vector<8x512xf32>
    tpu.vector_store %arg10[%c24, %c0_15], %24 {strides = array<i32>} : memref<72x512xf32, #tpu.memory_space<vmem>>, vector<8x512xf32>,
    %c32 = arith.constant 32 : index
    %c0_16 = arith.constant 0 : index
    %26 = vector.load %arg10[%c32, %c0_16] : memref<72x512xf32, #tpu.memory_space<vmem>>, vector<8x512xf32>
    tpu.vector_store %arg10[%c32, %c0_16], %3 {strides = array<i32>} : memref<72x512xf32, #tpu.memory_space<vmem>>, vector<8x512xf32>,
    %c511_i32 = arith.constant 511 : i32
    %27 = tpu.dynamic_rotate %3 by %c511_i32 dim 1 : vector<8x512xf32>, i32 -> vector<8x512xf32>
    %c5 = arith.constant 5 : index
    %c0_17 = arith.constant 0 : index
    %28 = vector.load %arg2[%c5, %c0_17] : memref<9x512xf32, #tpu.memory_space<vmem>>, vector<1x512xf32>
    %29 = vector.broadcast %28 : vector<1x512xf32> to vector<8x512xf32>
    %30 = arith.mulf %27, %29 : vector<8x512xf32>
    %c40 = arith.constant 40 : index
    %c0_18 = arith.constant 0 : index
    %31 = vector.load %arg10[%c40, %c0_18] : memref<72x512xf32, #tpu.memory_space<vmem>>, vector<8x512xf32>
    tpu.vector_store %arg10[%c40, %c0_18], %30 {strides = array<i32>} : memref<72x512xf32, #tpu.memory_space<vmem>>, vector<8x512xf32>,
    %c497_i32 = arith.constant 497 : i32
    %32 = tpu.dynamic_rotate %3 by %c497_i32 dim 1 : vector<8x512xf32>, i32 -> vector<8x512xf32>
    %c6 = arith.constant 6 : index
    %c0_19 = arith.constant 0 : index
    %33 = vector.load %arg2[%c6, %c0_19] : memref<9x512xf32, #tpu.memory_space<vmem>>, vector<1x512xf32>
    %34 = vector.broadcast %33 : vector<1x512xf32> to vector<8x512xf32>
    %35 = arith.mulf %32, %34 : vector<8x512xf32>
    %c48 = arith.constant 48 : index
    %c0_20 = arith.constant 0 : index
    %36 = vector.load %arg10[%c48, %c0_20] : memref<72x512xf32, #tpu.memory_space<vmem>>, vector<8x512xf32>
    tpu.vector_store %arg10[%c48, %c0_20], %35 {strides = array<i32>} : memref<72x512xf32, #tpu.memory_space<vmem>>, vector<8x512xf32>,
    %c496_i32 = arith.constant 496 : i32
    %37 = tpu.dynamic_rotate %3 by %c496_i32 dim 1 : vector<8x512xf32>, i32 -> vector<8x512xf32>
    %c7 = arith.constant 7 : index
    %c0_21 = arith.constant 0 : index
    %38 = vector.load %arg2[%c7, %c0_21] : memref<9x512xf32, #tpu.memory_space<vmem>>, vector<1x512xf32>
    %39 = vector.broadcast %38 : vector<1x512xf32> to vector<8x512xf32>
    %40 = arith.mulf %37, %39 : vector<8x512xf32>
    %c56 = arith.constant 56 : index
    %c0_22 = arith.constant 0 : index
    %41 = vector.load %arg10[%c56, %c0_22] : memref<72x512xf32, #tpu.memory_space<vmem>>, vector<8x512xf32>
    tpu.vector_store %arg10[%c56, %c0_22], %40 {strides = array<i32>} : memref<72x512xf32, #tpu.memory_space<vmem>>, vector<8x512xf32>,
    %c495_i32 = arith.constant 495 : i32
    %42 = tpu.dynamic_rotate %3 by %c495_i32 dim 1 : vector<8x512xf32>, i32 -> vector<8x512xf32>
    %c8_23 = arith.constant 8 : index
    %c0_24 = arith.constant 0 : index
    %43 = vector.load %arg2[%c8_23, %c0_24] : memref<9x512xf32, #tpu.memory_space<vmem>>, vector<1x512xf32>
    %44 = vector.broadcast %43 : vector<1x512xf32> to vector<8x512xf32>
    %45 = arith.mulf %42, %44 : vector<8x512xf32>
    %c64 = arith.constant 64 : index
    %c0_25 = arith.constant 0 : index
    %46 = vector.load %arg10[%c64, %c0_25] : memref<72x512xf32, #tpu.memory_space<vmem>>, vector<8x512xf32>
    tpu.vector_store %arg10[%c64, %c0_25], %45 {strides = array<i32>} : memref<72x512xf32, #tpu.memory_space<vmem>>, vector<8x512xf32>,
    %c0_26 = arith.constant 0 : index
    %c0_27 = arith.constant 0 : index
    %47 = vector.load %arg10[%c0_26, %c0_27] : memref<72x512xf32, #tpu.memory_space<vmem>>, vector<72x512xf32>
    %48 = arith.truncf %47 : vector<72x512xf32> to vector<72x512xbf16>
    %cst_28 = arith.constant dense<0.000000e+00> : vector<8x512xf32>
    %49 = tpu.matmul %4, %48, %cst_28 {dimension_numbers = #tpu.dot_dimension_numbers<[1], [0], [0], [1], [0, 0, 1, 1], [], []>} : vector<8x72xbf16>, vector<72x512xbf16>, vector<8x512xf32> -> vector<8x512xf32>
    %50 = vector.broadcast %5 : vector<8x1xf32> to vector<8x512xf32>
    %51 = arith.addf %49, %50 : vector<8x512xf32>
    %cst_29 = arith.constant 0.000000e+00 : f32
    %52 = vector.broadcast %cst_29 : f32 to vector<8x512xf32>
    %53 = arith.maximumf %51, %52 : vector<8x512xf32>
    %c0_30 = arith.constant 0 : index
    %c0_31 = arith.constant 0 : index
    %54 = vector.load %arg5[%c0_30, %c0_31] : memref<8x72xbf16, #tpu.memory_space<vmem>>, vector<8x72xbf16>
    %c0_32 = arith.constant 0 : index
    %c0_33 = arith.constant 0 : index
    %55 = vector.load %arg6[%c0_32, %c0_33] : memref<8x1xf32, #tpu.memory_space<vmem>>, vector<8x1xf32>
    %c17_i32_34 = arith.constant 17 : i32
    %56 = tpu.dynamic_rotate %53 by %c17_i32_34 dim 1 : vector<8x512xf32>, i32 -> vector<8x512xf32>
    %c0_35 = arith.constant 0 : index
    %c0_36 = arith.constant 0 : index
    %57 = vector.load %arg2[%c0_35, %c0_36] : memref<9x512xf32, #tpu.memory_space<vmem>>, vector<1x512xf32>
    %58 = vector.broadcast %57 : vector<1x512xf32> to vector<8x512xf32>
    %59 = arith.mulf %56, %58 : vector<8x512xf32>
    %c0_37 = arith.constant 0 : index
    %c0_38 = arith.constant 0 : index
    %60 = vector.load %arg10[%c0_37, %c0_38] : memref<72x512xf32, #tpu.memory_space<vmem>>, vector<8x512xf32>
    tpu.vector_store %arg10[%c0_37, %c0_38], %59 {strides = array<i32>} : memref<72x512xf32, #tpu.memory_space<vmem>>, vector<8x512xf32>,
    %c16_i32_39 = arith.constant 16 : i32
    %61 = tpu.dynamic_rotate %53 by %c16_i32_39 dim 1 : vector<8x512xf32>, i32 -> vector<8x512xf32>
    %c1_40 = arith.constant 1 : index
    %c0_41 = arith.constant 0 : index
    %62 = vector.load %arg2[%c1_40, %c0_41] : memref<9x512xf32, #tpu.memory_space<vmem>>, vector<1x512xf32>
    %63 = vector.broadcast %62 : vector<1x512xf32> to vector<8x512xf32>
    %64 = arith.mulf %61, %63 : vector<8x512xf32>
    %c8_42 = arith.constant 8 : index
    %c0_43 = arith.constant 0 : index
    %65 = vector.load %arg10[%c8_42, %c0_43] : memref<72x512xf32, #tpu.memory_space<vmem>>, vector<8x512xf32>
    tpu.vector_store %arg10[%c8_42, %c0_43], %64 {strides = array<i32>} : memref<72x512xf32, #tpu.memory_space<vmem>>, vector<8x512xf32>,
    %c15_i32_44 = arith.constant 15 : i32
    %66 = tpu.dynamic_rotate %53 by %c15_i32_44 dim 1 : vector<8x512xf32>, i32 -> vector<8x512xf32>
    %c2_45 = arith.constant 2 : index
    %c0_46 = arith.constant 0 : index
    %67 = vector.load %arg2[%c2_45, %c0_46] : memref<9x512xf32, #tpu.memory_space<vmem>>, vector<1x512xf32>
    %68 = vector.broadcast %67 : vector<1x512xf32> to vector<8x512xf32>
    %69 = arith.mulf %66, %68 : vector<8x512xf32>
    %c16_47 = arith.constant 16 : index
    %c0_48 = arith.constant 0 : index
    %70 = vector.load %arg10[%c16_47, %c0_48] : memref<72x512xf32, #tpu.memory_space<vmem>>, vector<8x512xf32>
    tpu.vector_store %arg10[%c16_47, %c0_48], %69 {strides = array<i32>} : memref<72x512xf32, #tpu.memory_space<vmem>>, vector<8x512xf32>,
    %c1_i32_49 = arith.constant 1 : i32
    %71 = tpu.dynamic_rotate %53 by %c1_i32_49 dim 1 : vector<8x512xf32>, i32 -> vector<8x512xf32>
    %c3_50 = arith.constant 3 : index
    %c0_51 = arith.constant 0 : index
    %72 = vector.load %arg2[%c3_50, %c0_51] : memref<9x512xf32, #tpu.memory_space<vmem>>, vector<1x512xf32>
    %73 = vector.broadcast %72 : vector<1x512xf32> to vector<8x512xf32>
    %74 = arith.mulf %71, %73 : vector<8x512xf32>
    %c24_52 = arith.constant 24 : index
    %c0_53 = arith.constant 0 : index
    %75 = vector.load %arg10[%c24_52, %c0_53] : memref<72x512xf32, #tpu.memory_space<vmem>>, vector<8x512xf32>
    tpu.vector_store %arg10[%c24_52, %c0_53], %74 {strides = array<i32>} : memref<72x512xf32, #tpu.memory_space<vmem>>, vector<8x512xf32>,
    %c32_54 = arith.constant 32 : index
    %c0_55 = arith.constant 0 : index
    %76 = vector.load %arg10[%c32_54, %c0_55] : memref<72x512xf32, #tpu.memory_space<vmem>>, vector<8x512xf32>
    tpu.vector_store %arg10[%c32_54, %c0_55], %53 {strides = array<i32>} : memref<72x512xf32, #tpu.memory_space<vmem>>, vector<8x512xf32>,
    %c511_i32_56 = arith.constant 511 : i32
    %77 = tpu.dynamic_rotate %53 by %c511_i32_56 dim 1 : vector<8x512xf32>, i32 -> vector<8x512xf32>
    %c5_57 = arith.constant 5 : index
    %c0_58 = arith.constant 0 : index
    %78 = vector.load %arg2[%c5_57, %c0_58] : memref<9x512xf32, #tpu.memory_space<vmem>>, vector<1x512xf32>
    %79 = vector.broadcast %78 : vector<1x512xf32> to vector<8x512xf32>
    %80 = arith.mulf %77, %79 : vector<8x512xf32>
    %c40_59 = arith.constant 40 : index
    %c0_60 = arith.constant 0 : index
    %81 = vector.load %arg10[%c40_59, %c0_60] : memref<72x512xf32, #tpu.memory_space<vmem>>, vector<8x512xf32>
    tpu.vector_store %arg10[%c40_59, %c0_60], %80 {strides = array<i32>} : memref<72x512xf32, #tpu.memory_space<vmem>>, vector<8x512xf32>,
    %c497_i32_61 = arith.constant 497 : i32
    %82 = tpu.dynamic_rotate %53 by %c497_i32_61 dim 1 : vector<8x512xf32>, i32 -> vector<8x512xf32>
    %c6_62 = arith.constant 6 : index
    %c0_63 = arith.constant 0 : index
    %83 = vector.load %arg2[%c6_62, %c0_63] : memref<9x512xf32, #tpu.memory_space<vmem>>, vector<1x512xf32>
    %84 = vector.broadcast %83 : vector<1x512xf32> to vector<8x512xf32>
    %85 = arith.mulf %82, %84 : vector<8x512xf32>
    %c48_64 = arith.constant 48 : index
    %c0_65 = arith.constant 0 : index
    %86 = vector.load %arg10[%c48_64, %c0_65] : memref<72x512xf32, #tpu.memory_space<vmem>>, vector<8x512xf32>
    tpu.vector_store %arg10[%c48_64, %c0_65], %85 {strides = array<i32>} : memref<72x512xf32, #tpu.memory_space<vmem>>, vector<8x512xf32>,
    %c496_i32_66 = arith.constant 496 : i32
    %87 = tpu.dynamic_rotate %53 by %c496_i32_66 dim 1 : vector<8x512xf32>, i32 -> vector<8x512xf32>
    %c7_67 = arith.constant 7 : index
    %c0_68 = arith.constant 0 : index
    %88 = vector.load %arg2[%c7_67, %c0_68] : memref<9x512xf32, #tpu.memory_space<vmem>>, vector<1x512xf32>
    %89 = vector.broadcast %88 : vector<1x512xf32> to vector<8x512xf32>
    %90 = arith.mulf %87, %89 : vector<8x512xf32>
    %c56_69 = arith.constant 56 : index
    %c0_70 = arith.constant 0 : index
    %91 = vector.load %arg10[%c56_69, %c0_70] : memref<72x512xf32, #tpu.memory_space<vmem>>, vector<8x512xf32>
    tpu.vector_store %arg10[%c56_69, %c0_70], %90 {strides = array<i32>} : memref<72x512xf32, #tpu.memory_space<vmem>>, vector<8x512xf32>,
    %c495_i32_71 = arith.constant 495 : i32
    %92 = tpu.dynamic_rotate %53 by %c495_i32_71 dim 1 : vector<8x512xf32>, i32 -> vector<8x512xf32>
    %c8_72 = arith.constant 8 : index
    %c0_73 = arith.constant 0 : index
    %93 = vector.load %arg2[%c8_72, %c0_73] : memref<9x512xf32, #tpu.memory_space<vmem>>, vector<1x512xf32>
    %94 = vector.broadcast %93 : vector<1x512xf32> to vector<8x512xf32>
    %95 = arith.mulf %92, %94 : vector<8x512xf32>
    %c64_74 = arith.constant 64 : index
    %c0_75 = arith.constant 0 : index
    %96 = vector.load %arg10[%c64_74, %c0_75] : memref<72x512xf32, #tpu.memory_space<vmem>>, vector<8x512xf32>
    tpu.vector_store %arg10[%c64_74, %c0_75], %95 {strides = array<i32>} : memref<72x512xf32, #tpu.memory_space<vmem>>, vector<8x512xf32>,
    %c0_76 = arith.constant 0 : index
    %c0_77 = arith.constant 0 : index
    %97 = vector.load %arg10[%c0_76, %c0_77] : memref<72x512xf32, #tpu.memory_space<vmem>>, vector<72x512xf32>
    %98 = arith.truncf %97 : vector<72x512xf32> to vector<72x512xbf16>
    %cst_78 = arith.constant dense<0.000000e+00> : vector<8x512xf32>
    %99 = tpu.matmul %54, %98, %cst_78 {dimension_numbers = #tpu.dot_dimension_numbers<[1], [0], [0], [1], [0, 0, 1, 1], [], []>} : vector<8x72xbf16>, vector<72x512xbf16>, vector<8x512xf32> -> vector<8x512xf32>
    %100 = vector.broadcast %55 : vector<8x1xf32> to vector<8x512xf32>
    %101 = arith.addf %99, %100 : vector<8x512xf32>
    %cst_79 = arith.constant 0.000000e+00 : f32
    %102 = vector.broadcast %cst_79 : f32 to vector<8x512xf32>
    %103 = arith.maximumf %101, %102 : vector<8x512xf32>
    %c0_80 = arith.constant 0 : index
    %c0_81 = arith.constant 0 : index
    %104 = vector.load %arg10[%c0_80, %c0_81] : memref<72x512xf32, #tpu.memory_space<vmem>>, vector<8x512xf32>
    tpu.vector_store %arg10[%c0_80, %c0_81], %103 {strides = array<i32>} : memref<72x512xf32, #tpu.memory_space<vmem>>, vector<8x512xf32>,
    %c511_i32_82 = arith.constant 511 : i32
    %105 = tpu.dynamic_rotate %103 by %c511_i32_82 dim 1 : vector<8x512xf32>, i32 -> vector<8x512xf32>
    %c5_83 = arith.constant 5 : index
    %c0_84 = arith.constant 0 : index
    %106 = vector.load %arg2[%c5_83, %c0_84] : memref<9x512xf32, #tpu.memory_space<vmem>>, vector<1x512xf32>
    %107 = vector.broadcast %106 : vector<1x512xf32> to vector<8x512xf32>
    %108 = arith.mulf %105, %107 : vector<8x512xf32>
    %c8_85 = arith.constant 8 : index
    %c0_86 = arith.constant 0 : index
    %109 = vector.load %arg10[%c8_85, %c0_86] : memref<72x512xf32, #tpu.memory_space<vmem>>, vector<8x512xf32>
    tpu.vector_store %arg10[%c8_85, %c0_86], %108 {strides = array<i32>} : memref<72x512xf32, #tpu.memory_space<vmem>>, vector<8x512xf32>,
    %c496_i32_87 = arith.constant 496 : i32
    %110 = tpu.dynamic_rotate %103 by %c496_i32_87 dim 1 : vector<8x512xf32>, i32 -> vector<8x512xf32>
    %c7_88 = arith.constant 7 : index
    %c0_89 = arith.constant 0 : index
    %111 = vector.load %arg2[%c7_88, %c0_89] : memref<9x512xf32, #tpu.memory_space<vmem>>, vector<1x512xf32>
    %112 = vector.broadcast %111 : vector<1x512xf32> to vector<8x512xf32>
    %113 = arith.mulf %110, %112 : vector<8x512xf32>
    %c16_90 = arith.constant 16 : index
    %c0_91 = arith.constant 0 : index
    %114 = vector.load %arg10[%c16_90, %c0_91] : memref<72x512xf32, #tpu.memory_space<vmem>>, vector<8x512xf32>
    tpu.vector_store %arg10[%c16_90, %c0_91], %113 {strides = array<i32>} : memref<72x512xf32, #tpu.memory_space<vmem>>, vector<8x512xf32>,
    %c495_i32_92 = arith.constant 495 : i32
    %115 = tpu.dynamic_rotate %103 by %c495_i32_92 dim 1 : vector<8x512xf32>, i32 -> vector<8x512xf32>
    %c8_93 = arith.constant 8 : index
    %c0_94 = arith.constant 0 : index
    %116 = vector.load %arg2[%c8_93, %c0_94] : memref<9x512xf32, #tpu.memory_space<vmem>>, vector<1x512xf32>
    %117 = vector.broadcast %116 : vector<1x512xf32> to vector<8x512xf32>
    %118 = arith.mulf %115, %117 : vector<8x512xf32>
    %c24_95 = arith.constant 24 : index
    %c0_96 = arith.constant 0 : index
    %119 = vector.load %arg10[%c24_95, %c0_96] : memref<72x512xf32, #tpu.memory_space<vmem>>, vector<8x512xf32>
    tpu.vector_store %arg10[%c24_95, %c0_96], %118 {strides = array<i32>} : memref<72x512xf32, #tpu.memory_space<vmem>>, vector<8x512xf32>,
    %c0_97 = arith.constant 0 : index
    %c0_98 = arith.constant 0 : index
    %120 = vector.load %arg10[%c0_97, %c0_98] : memref<72x512xf32, #tpu.memory_space<vmem>>, vector<32x512xf32>
    %121 = arith.truncf %120 : vector<32x512xf32> to vector<32x512xbf16>
    %c0_99 = arith.constant 0 : index
    %c0_100 = arith.constant 0 : index
    %122 = vector.load %arg7[%c0_99, %c0_100] : memref<16x32xbf16, #tpu.memory_space<vmem>>, vector<16x32xbf16>
    %cst_101 = arith.constant dense<0.000000e+00> : vector<16x512xf32>
    %123 = tpu.matmul %122, %121, %cst_101 {dimension_numbers = #tpu.dot_dimension_numbers<[1], [0], [0], [1], [0, 0, 1, 1], [], []>} : vector<16x32xbf16>, vector<32x512xbf16>, vector<16x512xf32> -> vector<16x512xf32>
    %c0_102 = arith.constant 0 : index
    %c0_103 = arith.constant 0 : index
    %124 = vector.load %arg8[%c0_102, %c0_103] : memref<16x1xf32, #tpu.memory_space<vmem>>, vector<16x1xf32>
    %125 = vector.broadcast %124 : vector<16x1xf32> to vector<16x512xf32>
    %126 = arith.addf %123, %125 : vector<16x512xf32>
    %cst_104 = arith.constant 0.000000e+00 : f32
    %127 = vector.broadcast %cst_104 : f32 to vector<16x512xf32>
    %128 = arith.maximumf %126, %127 : vector<16x512xf32>
    %c0_105 = arith.constant 0 : index
    %c0_106 = arith.constant 0 : index
    %c0_107 = arith.constant 0 : index
    %129 = vector.load %arg9[%c0_105, %c0_106, %c0_107] : memref<1x16x512xf32, #tpu.memory_space<vmem>>, vector<1x16x512xf32>
    %130 = vector.shape_cast %129 : vector<1x16x512xf32> to vector<16x512xf32>
    %131 = vector.shape_cast %128 : vector<16x512xf32> to vector<1x16x512xf32>
    tpu.vector_store %arg9[%c0_105, %c0_106, %c0_107], %131 {strides = array<i32>} : memref<1x16x512xf32, #tpu.memory_space<vmem>>, vector<1x16x512xf32>,
    return
  }
  func.func @transform_0(%arg0: i32) -> (i32, i32, i32) {
    %c0_i32 = arith.constant 0 : i32
    %c0_i32_0 = arith.constant 0 : i32
    %c0_i32_1 = arith.constant 0 : i32
    return %arg0, %c0_i32, %c0_i32_0 : i32, i32, i32
  }
  func.func @transform_1(%arg0: i32) -> (i32, i32) {
    %c0_i32 = arith.constant 0 : i32
    %c0_i32_0 = arith.constant 0 : i32
    %c0_i32_1 = arith.constant 0 : i32
    return %c0_i32, %c0_i32_0 : i32, i32
  }
  func.func @transform_2(%arg0: i32) -> (i32, i32) {
    %c0_i32 = arith.constant 0 : i32
    %c0_i32_0 = arith.constant 0 : i32
    %c0_i32_1 = arith.constant 0 : i32
    return %c0_i32, %c0_i32_0 : i32, i32
  }
  func.func @transform_3(%arg0: i32) -> (i32, i32) {
    %c0_i32 = arith.constant 0 : i32
    %c0_i32_0 = arith.constant 0 : i32
    %c0_i32_1 = arith.constant 0 : i32
    return %c0_i32, %c0_i32_0 : i32, i32
  }
  func.func @transform_4(%arg0: i32) -> (i32, i32) {
    %c0_i32 = arith.constant 0 : i32
    %c0_i32_0 = arith.constant 0 : i32
    %c0_i32_1 = arith.constant 0 : i32
    return %c0_i32, %c0_i32_0 : i32, i32
  }
  func.func @transform_5(%arg0: i32) -> (i32, i32) {
    %c0_i32 = arith.constant 0 : i32
    %c0_i32_0 = arith.constant 0 : i32
    %c0_i32_1 = arith.constant 0 : i32
    return %c0_i32, %c0_i32_0 : i32, i32
  }
  func.func @transform_6(%arg0: i32) -> (i32, i32) {
    %c0_i32 = arith.constant 0 : i32
    %c0_i32_0 = arith.constant 0 : i32
    %c0_i32_1 = arith.constant 0 : i32
    return %c0_i32, %c0_i32_0 : i32, i32
  }
  func.func @transform_7(%arg0: i32) -> (i32, i32) {
    %c0_i32 = arith.constant 0 : i32
    %c0_i32_0 = arith.constant 0 : i32
    %c0_i32_1 = arith.constant 0 : i32
    return %c0_i32, %c0_i32_0 : i32, i32
  }
  func.func @transform_8(%arg0: i32) -> (i32, i32, i32) {
    %c0_i32 = arith.constant 0 : i32
    %c0_i32_0 = arith.constant 0 : i32
    %c0_i32_1 = arith.constant 0 : i32
    return %arg0, %c0_i32, %c0_i32_0 : i32, i32, i32
  }
}

</mosaic_0001>

<llo_original>
// kernel: upsample_layer_forward.1
$region0: #{upsample_layer_forward.1}
  #allocation0 [shape = 'u32[]', space=smem, size = 0x4, offset = 0x4, fixed_abs, tag = 'smem constant byte address 0x4 - core index']
  #allocation1 [shape = 'u32[72,128]{1,0:T(1,128)}', space=vmem, size = 0x9000, scoped, tag = 'internal scratch']
  #allocation2 [shape = 'f32[72,512]{1,0:T(8,128)}', space=vmem, size = 0x24000, scoped, tag = 'scratch operand']
  %s0 = inlined_call_operand.vmem [shape: f32[1,4,512], index: 0, kind: input, shape index: {}]
  %s1 = inlined_call_operand.vmem [shape: f32[9,512], index: 1, kind: input, shape index: {}]
  %s2 = inlined_call_operand.vmem [shape: bf16[8,72], index: 2, kind: input, shape index: {}]
  %s3 = inlined_call_operand.vmem [shape: f32[8,1], index: 3, kind: input, shape index: {}]
  %s4 = inlined_call_operand.vmem [shape: bf16[8,72], index: 4, kind: input, shape index: {}]
  %s5 = inlined_call_operand.vmem [shape: f32[8,1], index: 5, kind: input, shape index: {}]
  %s6 = inlined_call_operand.vmem [shape: bf16[16,32], index: 6, kind: input, shape index: {}]
  %s7 = inlined_call_operand.vmem [shape: f32[16,1], index: 7, kind: input, shape index: {}]
  %s8 = inlined_call_operand.vmem [shape: f32[1,16,512], index: 8, kind: output, shape index: {}]
  %s9 = sld [smem:[#allocation0]]
  $region42: #{upsample_layer_forward.1} parent=0
    _
  %s11 = ssub.s32 1, %s9
  %s12 = scalar_select 0, %s11, %s9
  // Predicated region
  $region2: #{upsample_layer_forward.1} parent=0 // pred_check
    _
  $region3: #{upsample_layer_forward.1} parent=0 // pred_check_branch
    %14 = sbr.rel (0) target = $region5
  $region4: #{upsample_layer_forward.1} parent=0 // pred_region
    _
  $region5: #{upsample_layer_forward.1} parent=0 // pred_fallthru
    _
  // Predicated region
  $region6: #{upsample_layer_forward.1} parent=0 // pred_check
    _
  $region7: #{upsample_layer_forward.1} parent=0 // pred_check_branch
    %16 = sbr.rel (0) target = $region9
  $region8: #{upsample_layer_forward.1} parent=0 // pred_region
    _
  $region9: #{upsample_layer_forward.1} parent=0 // pred_fallthru
    _
  // Predicated region
  $region10: #{upsample_layer_forward.1} parent=0 // pred_check
    _
  $region11: #{upsample_layer_forward.1} parent=0 // pred_check_branch
    %18 = sbr.rel (0) target = $region13
  $region12: #{upsample_layer_forward.1} parent=0 // pred_region
    _
  $region13: #{upsample_layer_forward.1} parent=0 // pred_fallthru
    _
  // Predicated region
  $region14: #{upsample_layer_forward.1} parent=0 // pred_check
    _
  $region15: #{upsample_layer_forward.1} parent=0 // pred_check_branch
    %20 = sbr.rel (0) target = $region17
  $region16: #{upsample_layer_forward.1} parent=0 // pred_region
    _
  $region17: #{upsample_layer_forward.1} parent=0 // pred_fallthru
    _
  // Predicated region
  $region18: #{upsample_layer_forward.1} parent=0 // pred_check
    _
  $region19: #{upsample_layer_forward.1} parent=0 // pred_check_branch
    %22 = sbr.rel (0) target = $region21
  $region20: #{upsample_layer_forward.1} parent=0 // pred_region
    _
  $region21: #{upsample_layer_forward.1} parent=0 // pred_fallthru
    _
  // Predicated region
  $region22: #{upsample_layer_forward.1} parent=0 // pred_check
    _
  $region23: #{upsample_layer_forward.1} parent=0 // pred_check_branch
    %24 = sbr.rel (0) target = $region25
  $region24: #{upsample_layer_forward.1} parent=0 // pred_region
    _
  $region25: #{upsample_layer_forward.1} parent=0 // pred_fallthru
    _
  // Predicated region
  $region26: #{upsample_layer_forward.1} parent=0 // pred_check
    _
  $region27: #{upsample_layer_forward.1} parent=0 // pred_check_branch
    %26 = sbr.rel (0) target = $region29
  $region28: #{upsample_layer_forward.1} parent=0 // pred_region
    _
  $region29: #{upsample_layer_forward.1} parent=0 // pred_fallthru
    _
  // Predicated region
  $region30: #{upsample_layer_forward.1} parent=0 // pred_check
    _
  $region31: #{upsample_layer_forward.1} parent=0 // pred_check_branch
    %28 = sbr.rel (0) target = $region33
  $region32: #{upsample_layer_forward.1} parent=0 // pred_region
    _
  $region33: #{upsample_layer_forward.1} parent=0 // pred_fallthru
    _
  %v30 = vld [vmem:[%s0] sm:$0xff]
  %v31 = vld [vmem:[%s0 + $0x8] sm:$0xff]
  %34 = vst [vmem:[#allocation1] ss:$2 sm:$0xff] %v30
  %s35 = scalar_lea.vmem [#allocation1], 16
  %36 = vst [vmem:[%s35] ss:$2 sm:$0xff] %v31
  %v37 = vld.sshfl [vmem:[#allocation1] sm:$0xff pattern:$0x75316420]
  %v38 = vld.sshfl [vmem:[#allocation1 + $0x8] sm:$0xff pattern:$0x75316420]
  %v39 = vld.sshfl [vmem:[#allocation1 + $0x10] sm:$0xff pattern:$0x75316420]
  %v40 = vld.sshfl [vmem:[#allocation1 + $0x18] sm:$0xff pattern:$0x75316420]
  %vm45 = vcmask 1043456
  %v46 = vsel %vm45, %v37, 0.0
  %v47 = vsel %vm45, %v38, 0.0
  %v48 = vsel %vm45, %v39, 0.0
  %v49 = vsel %vm45, %v40, 0.0
  %v50 = vld [vmem:[%s2] sm:$0xf]
  %v51 = vld [vmem:[%s3] sm:$0xff]
  %52 = vrot.lane.b32.xlu0 %v46, 17
  %v53 = vpop.permute.xlu0 %52
  %54 = vrot.lane.b32.xlu0 %v47, 17
  %v55 = vpop.permute.xlu0 %54
  %56 = vrot.lane.b32.xlu0 %v48, 17
  %v57 = vpop.permute.xlu0 %56
  %58 = vrot.lane.b32.xlu0 %v49, 17
  %v59 = vpop.permute.xlu0 %58
  %v60 = vlaneseq
  %v61 = vand.u32 %v60, 127
  %vm62 = vcmp.lt.s32.totalorder %v61, 17
  %v63 = vsel %vm62, %v57, %v59
  %v64 = vsel %vm62, %v55, %v57
  %v65 = vsel %vm62, %v53, %v55
  %v66 = vsel %vm62, %v59, %v53
  %v67 = vld [vmem:[%s1] ss:$8 sm:$0xf]
  %v69 = vperm.slane %v67, 0
  %v70 = vperm.slane %v67, 1
  %v71 = vperm.slane %v67, 2
  %v72 = vperm.slane %v67, 3
  %v77 = vmul.f32 %v66, %v69
  %v78 = vmul.f32 %v65, %v70
  %v79 = vmul.f32 %v64, %v71
  %v80 = vmul.f32 %v63, %v72
  %81 = vst [vmem:[#allocation2] sm:$0xff] %v77
  %82 = vst [vmem:[#allocation2 + $0x8] sm:$0xff] %v78
  %83 = vst [vmem:[#allocation2 + $0x10] sm:$0xff] %v79
  %84 = vst [vmem:[#allocation2 + $0x18] sm:$0xff] %v80
  %85 = vrot.lane.b32.xlu0 %v46, 16
  %v86 = vpop.permute.xlu0 %85
  %87 = vrot.lane.b32.xlu0 %v47, 16
  %v88 = vpop.permute.xlu0 %87
  %89 = vrot.lane.b32.xlu0 %v48, 16
  %v90 = vpop.permute.xlu0 %89
  %91 = vrot.lane.b32.xlu0 %v49, 16
  %v92 = vpop.permute.xlu0 %91
  %vm93 = vcmp.lt.s32.totalorder %v61, 16
  %v94 = vsel %vm93, %v90, %v92
  %v95 = vsel %vm93, %v88, %v90
  %v96 = vsel %vm93, %v86, %v88
  %v97 = vsel %vm93, %v92, %v86
  %s98 = scalar_lea.vmem %s1, 1
  %v99 = vld [vmem:[%s98] ss:$8 sm:$0xf]
  %v101 = vperm.slane %v99, 0
  %v102 = vperm.slane %v99, 1
  %v103 = vperm.slane %v99, 2
  %v104 = vperm.slane %v99, 3
  %v109 = vmul.f32 %v97, %v101
  %v110 = vmul.f32 %v96, %v102
  %v111 = vmul.f32 %v95, %v103
  %v112 = vmul.f32 %v94, %v104
  %113 = vst [vmem:[#allocation2 + $0x20] sm:$0xff] %v109
  %114 = vst [vmem:[#allocation2 + $0x28] sm:$0xff] %v110
  %115 = vst [vmem:[#allocation2 + $0x30] sm:$0xff] %v111
  %116 = vst [vmem:[#allocation2 + $0x38] sm:$0xff] %v112
  %117 = vrot.lane.b32.xlu0 %v46, 15
  %v118 = vpop.permute.xlu0 %117
  %119 = vrot.lane.b32.xlu0 %v47, 15
  %v120 = vpop.permute.xlu0 %119
  %121 = vrot.lane.b32.xlu0 %v48, 15
  %v122 = vpop.permute.xlu0 %121
  %123 = vrot.lane.b32.xlu0 %v49, 15
  %v124 = vpop.permute.xlu0 %123
  %vm125 = vcmp.lt.s32.totalorder %v61, 15
  %v126 = vsel %vm125, %v122, %v124
  %v127 = vsel %vm125, %v120, %v122
  %v128 = vsel %vm125, %v118, %v120
  %v129 = vsel %vm125, %v124, %v118
  %s130 = scalar_lea.vmem %s1, 2
  %v131 = vld [vmem:[%s130] ss:$8 sm:$0xf]
  %v133 = vperm.slane %v131, 0
  %v134 = vperm.slane %v131, 1
  %v135 = vperm.slane %v131, 2
  %v136 = vperm.slane %v131, 3
  %v141 = vmul.f32 %v129, %v133
  %v142 = vmul.f32 %v128, %v134
  %v143 = vmul.f32 %v127, %v135
  %v144 = vmul.f32 %v126, %v136
  %145 = vst [vmem:[#allocation2 + $0x40] sm:$0xff] %v141
  %146 = vst [vmem:[#allocation2 + $0x48] sm:$0xff] %v142
  %147 = vst [vmem:[#allocation2 + $0x50] sm:$0xff] %v143
  %148 = vst [vmem:[#allocation2 + $0x58] sm:$0xff] %v144
  %149 = vrot.lane.b32.xlu0 %v46, 1
  %v150 = vpop.permute.xlu0 %149
  %151 = vrot.lane.b32.xlu0 %v47, 1
  %v152 = vpop.permute.xlu0 %151
  %153 = vrot.lane.b32.xlu0 %v48, 1
  %v154 = vpop.permute.xlu0 %153
  %155 = vrot.lane.b32.xlu0 %v49, 1
  %v156 = vpop.permute.xlu0 %155
  %vm157 = vcmp.lt.s32.totalorder %v61, 1
  %v158 = vsel %vm157, %v154, %v156
  %v159 = vsel %vm157, %v152, %v154
  %v160 = vsel %vm157, %v150, %v152
  %v161 = vsel %vm157, %v156, %v150
  %s162 = scalar_lea.vmem %s1, 3
  %v163 = vld [vmem:[%s162] ss:$8 sm:$0xf]
  %v165 = vperm.slane %v163, 0
  %v166 = vperm.slane %v163, 1
  %v167 = vperm.slane %v163, 2
  %v168 = vperm.slane %v163, 3
  %v173 = vmul.f32 %v161, %v165
  %v174 = vmul.f32 %v160, %v166
  %v175 = vmul.f32 %v159, %v167
  %v176 = vmul.f32 %v158, %v168
  %177 = vst [vmem:[#allocation2 + $0x60] sm:$0xff] %v173
  %178 = vst [vmem:[#allocation2 + $0x68] sm:$0xff] %v174
  %179 = vst [vmem:[#allocation2 + $0x70] sm:$0xff] %v175
  %180 = vst [vmem:[#allocation2 + $0x78] sm:$0xff] %v176
  %181 = vst [vmem:[#allocation2 + $0x80] sm:$0xff] %v46
  %182 = vst [vmem:[#allocation2 + $0x88] sm:$0xff] %v47
  %183 = vst [vmem:[#allocation2 + $0x90] sm:$0xff] %v48
  %184 = vst [vmem:[#allocation2 + $0x98] sm:$0xff] %v49
  %185 = vrot.lane.b32.xlu0 %v46, 127
  %v186 = vpop.permute.xlu0 %185
  %187 = vrot.lane.b32.xlu0 %v47, 127
  %v188 = vpop.permute.xlu0 %187
  %189 = vrot.lane.b32.xlu0 %v48, 127
  %v190 = vpop.permute.xlu0 %189
  %191 = vrot.lane.b32.xlu0 %v49, 127
  %v192 = vpop.permute.xlu0 %191
  %vm193 = vcmp.lt.s32.totalorder %v61, 127
  %v194 = vsel %vm193, %v190, %v192
  %v195 = vsel %vm193, %v188, %v190
  %v196 = vsel %vm193, %v186, %v188
  %v197 = vsel %vm193, %v192, %v186
  %s198 = scalar_lea.vmem %s1, 5
  %v199 = vld [vmem:[%s198] ss:$8 sm:$0xf]
  %v201 = vperm.slane %v199, 0
  %v202 = vperm.slane %v199, 1
  %v203 = vperm.slane %v199, 2
  %v204 = vperm.slane %v199, 3
  %v209 = vmul.f32 %v196, %v201
  %v210 = vmul.f32 %v195, %v202
  %v211 = vmul.f32 %v194, %v203
  %v212 = vmul.f32 %v197, %v204
  %213 = vst [vmem:[#allocation2 + $0xa0] sm:$0xff] %v209
  %214 = vst [vmem:[#allocation2 + $0xa8] sm:$0xff] %v210
  %215 = vst [vmem:[#allocation2 + $0xb0] sm:$0xff] %v211
  %216 = vst [vmem:[#allocation2 + $0xb8] sm:$0xff] %v212
  %217 = vrot.lane.b32.xlu0 %v46, 113
  %v218 = vpop.permute.xlu0 %217
  %219 = vrot.lane.b32.xlu0 %v47, 113
  %v220 = vpop.permute.xlu0 %219
  %221 = vrot.lane.b32.xlu0 %v48, 113
  %v222 = vpop.permute.xlu0 %221
  %223 = vrot.lane.b32.xlu0 %v49, 113
  %v224 = vpop.permute.xlu0 %223
  %vm225 = vcmp.lt.s32.totalorder %v61, 113
  %v226 = vsel %vm225, %v222, %v224
  %v227 = vsel %vm225, %v220, %v222
  %v228 = vsel %vm225, %v218, %v220
  %v229 = vsel %vm225, %v224, %v218
  %s230 = scalar_lea.vmem %s1, 6
  %v231 = vld [vmem:[%s230] ss:$8 sm:$0xf]
  %v233 = vperm.slane %v231, 0
  %v234 = vperm.slane %v231, 1
  %v235 = vperm.slane %v231, 2
  %v236 = vperm.slane %v231, 3
  %v241 = vmul.f32 %v228, %v233
  %v242 = vmul.f32 %v227, %v234
  %v243 = vmul.f32 %v226, %v235
  %v244 = vmul.f32 %v229, %v236
  %245 = vst [vmem:[#allocation2 + $0xc0] sm:$0xff] %v241
  %246 = vst [vmem:[#allocation2 + $0xc8] sm:$0xff] %v242
  %247 = vst [vmem:[#allocation2 + $0xd0] sm:$0xff] %v243
  %248 = vst [vmem:[#allocation2 + $0xd8] sm:$0xff] %v244
  %249 = vrot.lane.b32.xlu0 %v46, 112
  %v250 = vpop.permute.xlu0 %249
  %251 = vrot.lane.b32.xlu0 %v47, 112
  %v252 = vpop.permute.xlu0 %251
  %253 = vrot.lane.b32.xlu0 %v48, 112
  %v254 = vpop.permute.xlu0 %253
  %255 = vrot.lane.b32.xlu0 %v49, 112
  %v256 = vpop.permute.xlu0 %255
  %vm257 = vcmp.lt.s32.totalorder %v61, 112
  %v258 = vsel %vm257, %v254, %v256
  %v259 = vsel %vm257, %v252, %v254
  %v260 = vsel %vm257, %v250, %v252
  %v261 = vsel %vm257, %v256, %v250
  %s262 = scalar_lea.vmem %s1, 7
  %v263 = vld [vmem:[%s262] ss:$8 sm:$0xf]
  %v265 = vperm.slane %v263, 0
  %v266 = vperm.slane %v263, 1
  %v267 = vperm.slane %v263, 2
  %v268 = vperm.slane %v263, 3
  %v273 = vmul.f32 %v260, %v265
  %v274 = vmul.f32 %v259, %v266
  %v275 = vmul.f32 %v258, %v267
  %v276 = vmul.f32 %v261, %v268
  %277 = vst [vmem:[#allocation2 + $0xe0] sm:$0xff] %v273
  %278 = vst [vmem:[#allocation2 + $0xe8] sm:$0xff] %v274
  %279 = vst [vmem:[#allocation2 + $0xf0] sm:$0xff] %v275
  %280 = vst [vmem:[#allocation2 + $0xf8] sm:$0xff] %v276
  %281 = vrot.lane.b32.xlu0 %v46, 111
  %v282 = vpop.permute.xlu0 %281
  %283 = vrot.lane.b32.xlu0 %v47, 111
  %v284 = vpop.permute.xlu0 %283
  %285 = vrot.lane.b32.xlu0 %v48, 111
  %v286 = vpop.permute.xlu0 %285
  %287 = vrot.lane.b32.xlu0 %v49, 111
  %v288 = vpop.permute.xlu0 %287
  %vm289 = vcmp.lt.s32.totalorder %v61, 111
  %v290 = vsel %vm289, %v286, %v288
  %v291 = vsel %vm289, %v284, %v286
  %v292 = vsel %vm289, %v282, %v284
  %v293 = vsel %vm289, %v288, %v282
  %s294 = scalar_lea.vmem %s1, 32
  %v295 = vld [vmem:[%s294] ss:$8 sm:$0xf]
  %v297 = vperm.slane %v295, 0
  %v298 = vperm.slane %v295, 1
  %v299 = vperm.slane %v295, 2
  %v300 = vperm.slane %v295, 3
  %v305 = vmul.f32 %v292, %v297
  %v306 = vmul.f32 %v291, %v298
  %v307 = vmul.f32 %v290, %v299
  %v308 = vmul.f32 %v293, %v300
  %309 = vst [vmem:[#allocation2 + $0x100] sm:$0xff] %v305
  %310 = vst [vmem:[#allocation2 + $0x108] sm:$0xff] %v306
  %311 = vst [vmem:[#allocation2 + $0x110] sm:$0xff] %v307
  %312 = vst [vmem:[#allocation2 + $0x118] sm:$0xff] %v308
  %v313 = vld [vmem:[#allocation2] sm:$0xff]
  %v314 = vld [vmem:[#allocation2 + $0x8] sm:$0xff]
  %v315 = vld [vmem:[#allocation2 + $0x10] sm:$0xff]
  %v316 = vld [vmem:[#allocation2 + $0x18] sm:$0xff]
  %v317 = vld [vmem:[#allocation2 + $0x20] sm:$0xff]
  %v318 = vld [vmem:[#allocation2 + $0x28] sm:$0xff]
  %v319 = vld [vmem:[#allocation2 + $0x30] sm:$0xff]
  %v320 = vld [vmem:[#allocation2 + $0x38] sm:$0xff]
  %v321 = vld [vmem:[#allocation2 + $0x40] sm:$0xff]
  %v322 = vld [vmem:[#allocation2 + $0x48] sm:$0xff]
  %v323 = vld [vmem:[#allocation2 + $0x50] sm:$0xff]
  %v324 = vld [vmem:[#allocation2 + $0x58] sm:$0xff]
  %v325 = vld [vmem:[#allocation2 + $0x60] sm:$0xff]
  %v326 = vld [vmem:[#allocation2 + $0x68] sm:$0xff]
  %v327 = vld [vmem:[#allocation2 + $0x70] sm:$0xff]
  %v328 = vld [vmem:[#allocation2 + $0x78] sm:$0xff]
  %v329 = vld [vmem:[#allocation2 + $0x80] sm:$0xff]
  %v330 = vld [vmem:[#allocation2 + $0x88] sm:$0xff]
  %v331 = vld [vmem:[#allocation2 + $0x90] sm:$0xff]
  %v332 = vld [vmem:[#allocation2 + $0x98] sm:$0xff]
  %v333 = vld [vmem:[#allocation2 + $0xa0] sm:$0xff]
  %v334 = vld [vmem:[#allocation2 + $0xa8] sm:$0xff]
  %v335 = vld [vmem:[#allocation2 + $0xb0] sm:$0xff]
  %v336 = vld [vmem:[#allocation2 + $0xb8] sm:$0xff]
  %v337 = vld [vmem:[#allocation2 + $0xc0] sm:$0xff]
  %v338 = vld [vmem:[#allocation2 + $0xc8] sm:$0xff]
  %v339 = vld [vmem:[#allocation2 + $0xd0] sm:$0xff]
  %v340 = vld [vmem:[#allocation2 + $0xd8] sm:$0xff]
  %v341 = vld [vmem:[#allocation2 + $0xe0] sm:$0xff]
  %v342 = vld [vmem:[#allocation2 + $0xe8] sm:$0xff]
  %v343 = vld [vmem:[#allocation2 + $0xf0] sm:$0xff]
  %v344 = vld [vmem:[#allocation2 + $0xf8] sm:$0xff]
  %v345 = vld [vmem:[#allocation2 + $0x100] sm:$0xff]
  %v346 = vld [vmem:[#allocation2 + $0x108] sm:$0xff]
  %v347 = vld [vmem:[#allocation2 + $0x110] sm:$0xff]
  %v348 = vld [vmem:[#allocation2 + $0x118] sm:$0xff]
  %v349 = vpack.c.bf16 %v317, %v313
  %v350 = vpack.c.bf16 %v318, %v314
  %v351 = vpack.c.bf16 %v319, %v315
  %v352 = vpack.c.bf16 %v320, %v316
  %v353 = vpack.c.bf16 %v325, %v321
  %v354 = vpack.c.bf16 %v326, %v322
  %v355 = vpack.c.bf16 %v327, %v323
  %v356 = vpack.c.bf16 %v328, %v324
  %v357 = vpack.c.bf16 %v333, %v329
  %v358 = vpack.c.bf16 %v334, %v330
  %v359 = vpack.c.bf16 %v335, %v331
  %v360 = vpack.c.bf16 %v336, %v332
  %v361 = vpack.c.bf16 %v341, %v337
  %v362 = vpack.c.bf16 %v342, %v338
  %v363 = vpack.c.bf16 %v343, %v339
  %v364 = vpack.c.bf16 %v344, %v340
  %v365 = vpack.c.bf16 %v345, %v345
  %v366 = vpack.c.bf16 %v346, %v346
  %v367 = vpack.c.bf16 %v347, %v347
  %v368 = vpack.c.bf16 %v348, %v348
  %370 = vset.pattern.permute.xlu0 0
  %371 = vperm.xlu0 %370, %v51
  %v372 = vpop.permute.xlu0 %371
  %vm374 = vcmask 588800
  %v376 = vsel %vm374, %v50, 0
  %v379 = vsel %vm45, %v365, 0
  %v382 = vsel %vm45, %v366, 0
  %v385 = vsel %vm45, %v367, 0
  %v388 = vsel %vm45, %v368, 0
  %390 = vmatpush.bf16.msra.mxu0 0
  %391 = vmatpush.bf16.msra.mxu0 0
  %392 = vmatpush.bf16.msra.mxu0 0
  %393 = vmatpush.bf16.msra.mxu0 %v379
  %394 = vmatpush.bf16.msra.mxu0 %v361
  %395 = vmatpush.bf16.msra.mxu0 %v357
  %396 = vmatpush.bf16.msra.mxu0 %v353
  %397 = vmatpush.bf16.msra.mxu0 %v349
  %398 = vmatmul.bf16.gmra.mxu0 %v376
  %v399 = vpop.f32.mrf.mxu0
  %v400 = vadd.f32 %v372, %v399
  %v401 = vpop.f32.mrf.mxu0
  %402 = vdwg.mxu0
  %403 = vmatpush.bf16.msra.mxu0 0
  %404 = vmatpush.bf16.msra.mxu0 0
  %405 = vmatpush.bf16.msra.mxu0 0
  %406 = vmatpush.bf16.msra.mxu0 %v382
  %407 = vmatpush.bf16.msra.mxu0 %v362
  %408 = vmatpush.bf16.msra.mxu0 %v358
  %409 = vmatpush.bf16.msra.mxu0 %v354
  %410 = vmatpush.bf16.msra.mxu0 %v350
  %411 = vmatmul.bf16.gmra.mxu0 %v376
  %v412 = vpop.f32.mrf.mxu0
  %v413 = vadd.f32 %v372, %v412
  %v414 = vpop.f32.mrf.mxu0
  %415 = vdwg.mxu0
  %416 = vmatpush.bf16.msra.mxu0 0
  %417 = vmatpush.bf16.msra.mxu0 0
  %418 = vmatpush.bf16.msra.mxu0 0
  %419 = vmatpush.bf16.msra.mxu0 %v385
  %420 = vmatpush.bf16.msra.mxu0 %v363
  %421 = vmatpush.bf16.msra.mxu0 %v359
  %422 = vmatpush.bf16.msra.mxu0 %v355
  %423 = vmatpush.bf16.msra.mxu0 %v351
  %424 = vmatmul.bf16.gmra.mxu0 %v376
  %v425 = vpop.f32.mrf.mxu0
  %v426 = vadd.f32 %v372, %v425
  %v427 = vpop.f32.mrf.mxu0
  %428 = vdwg.mxu0
  %429 = vmatpush.bf16.msra.mxu0 0
  %430 = vmatpush.bf16.msra.mxu0 0
  %431 = vmatpush.bf16.msra.mxu0 0
  %432 = vmatpush.bf16.msra.mxu0 %v388
  %433 = vmatpush.bf16.msra.mxu0 %v364
  %434 = vmatpush.bf16.msra.mxu0 %v360
  %435 = vmatpush.bf16.msra.mxu0 %v356
  %436 = vmatpush.bf16.msra.mxu0 %v352
  %437 = vmatmul.bf16.gmra.mxu0 %v376
  %v438 = vpop.f32.mrf.mxu0
  %v439 = vadd.f32 %v372, %v438
  %v440 = vpop.f32.mrf.mxu0
  %441 = vdwg.mxu0
  %v442 = vmax.f32 %v400, 0.0
  %v443 = vmax.f32 %v413, 0.0
  %v444 = vmax.f32 %v426, 0.0
  %v445 = vmax.f32 %v439, 0.0
  %v446 = vld [vmem:[%s4] sm:$0xf]
  %v447 = vld [vmem:[%s5] sm:$0xff]
  %448 = vrot.lane.b32.xlu0 %v442, 17
  %v449 = vpop.permute.xlu0 %448
  %450 = vrot.lane.b32.xlu0 %v443, 17
  %v451 = vpop.permute.xlu0 %450
  %452 = vrot.lane.b32.xlu0 %v444, 17
  %v453 = vpop.permute.xlu0 %452
  %454 = vrot.lane.b32.xlu0 %v445, 17
  %v455 = vpop.permute.xlu0 %454
  %v456 = vsel %vm62, %v453, %v455
  %v457 = vsel %vm62, %v451, %v453
  %v458 = vsel %vm62, %v449, %v451
  %v459 = vsel %vm62, %v455, %v449
  %v460 = vld [vmem:[%s1] ss:$8 sm:$0xf]
  %v462 = vperm.slane %v460, 0
  %v463 = vperm.slane %v460, 1
  %v464 = vperm.slane %v460, 2
  %v465 = vperm.slane %v460, 3
  %v470 = vmul.f32 %v459, %v462
  %v471 = vmul.f32 %v458, %v463
  %v472 = vmul.f32 %v457, %v464
  %v473 = vmul.f32 %v456, %v465
  %474 = vst [vmem:[#allocation2] sm:$0xff] %v470
  %475 = vst [vmem:[#allocation2 + $0x8] sm:$0xff] %v471
  %476 = vst [vmem:[#allocation2 + $0x10] sm:$0xff] %v472
  %477 = vst [vmem:[#allocation2 + $0x18] sm:$0xff] %v473
  %478 = vrot.lane.b32.xlu0 %v442, 16
  %v479 = vpop.permute.xlu0 %478
  %480 = vrot.lane.b32.xlu0 %v443, 16
  %v481 = vpop.permute.xlu0 %480
  %482 = vrot.lane.b32.xlu0 %v444, 16
  %v483 = vpop.permute.xlu0 %482
  %484 = vrot.lane.b32.xlu0 %v445, 16
  %v485 = vpop.permute.xlu0 %484
  %v486 = vsel %vm93, %v483, %v485
  %v487 = vsel %vm93, %v481, %v483
  %v488 = vsel %vm93, %v479, %v481
  %v489 = vsel %vm93, %v485, %v479
  %v490 = vld [vmem:[%s98] ss:$8 sm:$0xf]
  %v492 = vperm.slane %v490, 0
  %v493 = vperm.slane %v490, 1
  %v494 = vperm.slane %v490, 2
  %v495 = vperm.slane %v490, 3
  %v500 = vmul.f32 %v489, %v492
  %v501 = vmul.f32 %v488, %v493
  %v502 = vmul.f32 %v487, %v494
  %v503 = vmul.f32 %v486, %v495
  %504 = vst [vmem:[#allocation2 + $0x20] sm:$0xff] %v500
  %505 = vst [vmem:[#allocation2 + $0x28] sm:$0xff] %v501
  %506 = vst [vmem:[#allocation2 + $0x30] sm:$0xff] %v502
  %507 = vst [vmem:[#allocation2 + $0x38] sm:$0xff] %v503
  %508 = vrot.lane.b32.xlu0 %v442, 15
  %v509 = vpop.permute.xlu0 %508
  %510 = vrot.lane.b32.xlu0 %v443, 15
  %v511 = vpop.permute.xlu0 %510
  %512 = vrot.lane.b32.xlu0 %v444, 15
  %v513 = vpop.permute.xlu0 %512
  %514 = vrot.lane.b32.xlu0 %v445, 15
  %v515 = vpop.permute.xlu0 %514
  %v516 = vsel %vm125, %v513, %v515
  %v517 = vsel %vm125, %v511, %v513
  %v518 = vsel %vm125, %v509, %v511
  %v519 = vsel %vm125, %v515, %v509
  %v520 = vld [vmem:[%s130] ss:$8 sm:$0xf]
  %v522 = vperm.slane %v520, 0
  %v523 = vperm.slane %v520, 1
  %v524 = vperm.slane %v520, 2
  %v525 = vperm.slane %v520, 3
  %v530 = vmul.f32 %v519, %v522
  %v531 = vmul.f32 %v518, %v523
  %v532 = vmul.f32 %v517, %v524
  %v533 = vmul.f32 %v516, %v525
  %534 = vst [vmem:[#allocation2 + $0x40] sm:$0xff] %v530
  %535 = vst [vmem:[#allocation2 + $0x48] sm:$0xff] %v531
  %536 = vst [vmem:[#allocation2 + $0x50] sm:$0xff] %v532
  %537 = vst [vmem:[#allocation2 + $0x58] sm:$0xff] %v533
  %538 = vrot.lane.b32.xlu0 %v442, 1
  %v539 = vpop.permute.xlu0 %538
  %540 = vrot.lane.b32.xlu0 %v443, 1
  %v541 = vpop.permute.xlu0 %540
  %542 = vrot.lane.b32.xlu0 %v444, 1
  %v543 = vpop.permute.xlu0 %542
  %544 = vrot.lane.b32.xlu0 %v445, 1
  %v545 = vpop.permute.xlu0 %544
  %v546 = vsel %vm157, %v543, %v545
  %v547 = vsel %vm157, %v541, %v543
  %v548 = vsel %vm157, %v539, %v541
  %v549 = vsel %vm157, %v545, %v539
  %v550 = vld [vmem:[%s162] ss:$8 sm:$0xf]
  %v552 = vperm.slane %v550, 0
  %v553 = vperm.slane %v550, 1
  %v554 = vperm.slane %v550, 2
  %v555 = vperm.slane %v550, 3
  %v560 = vmul.f32 %v549, %v552
  %v561 = vmul.f32 %v548, %v553
  %v562 = vmul.f32 %v547, %v554
  %v563 = vmul.f32 %v546, %v555
  %564 = vst [vmem:[#allocation2 + $0x60] sm:$0xff] %v560
  %565 = vst [vmem:[#allocation2 + $0x68] sm:$0xff] %v561
  %566 = vst [vmem:[#allocation2 + $0x70] sm:$0xff] %v562
  %567 = vst [vmem:[#allocation2 + $0x78] sm:$0xff] %v563
  %568 = vst [vmem:[#allocation2 + $0x80] sm:$0xff] %v442
  %569 = vst [vmem:[#allocation2 + $0x88] sm:$0xff] %v443
  %570 = vst [vmem:[#allocation2 + $0x90] sm:$0xff] %v444
  %571 = vst [vmem:[#allocation2 + $0x98] sm:$0xff] %v445
  %572 = vrot.lane.b32.xlu0 %v442, 127
  %v573 = vpop.permute.xlu0 %572
  %574 = vrot.lane.b32.xlu0 %v443, 127
  %v575 = vpop.permute.xlu0 %574
  %576 = vrot.lane.b32.xlu0 %v444, 127
  %v577 = vpop.permute.xlu0 %576
  %578 = vrot.lane.b32.xlu0 %v445, 127
  %v579 = vpop.permute.xlu0 %578
  %v580 = vsel %vm193, %v577, %v579
  %v581 = vsel %vm193, %v575, %v577
  %v582 = vsel %vm193, %v573, %v575
  %v583 = vsel %vm193, %v579, %v573
  %v584 = vld [vmem:[%s198] ss:$8 sm:$0xf]
  %v586 = vperm.slane %v584, 0
  %v587 = vperm.slane %v584, 1
  %v588 = vperm.slane %v584, 2
  %v589 = vperm.slane %v584, 3
  %v594 = vmul.f32 %v582, %v586
  %v595 = vmul.f32 %v581, %v587
  %v596 = vmul.f32 %v580, %v588
  %v597 = vmul.f32 %v583, %v589
  %598 = vst [vmem:[#allocation2 + $0xa0] sm:$0xff] %v594
  %599 = vst [vmem:[#allocation2 + $0xa8] sm:$0xff] %v595
  %600 = vst [vmem:[#allocation2 + $0xb0] sm:$0xff] %v596
  %601 = vst [vmem:[#allocation2 + $0xb8] sm:$0xff] %v597
  %602 = vrot.lane.b32.xlu0 %v442, 113
  %v603 = vpop.permute.xlu0 %602
  %604 = vrot.lane.b32.xlu0 %v443, 113
  %v605 = vpop.permute.xlu0 %604
  %606 = vrot.lane.b32.xlu0 %v444, 113
  %v607 = vpop.permute.xlu0 %606
  %608 = vrot.lane.b32.xlu0 %v445, 113
  %v609 = vpop.permute.xlu0 %608
  %v610 = vsel %vm225, %v607, %v609
  %v611 = vsel %vm225, %v605, %v607
  %v612 = vsel %vm225, %v603, %v605
  %v613 = vsel %vm225, %v609, %v603
  %v614 = vld [vmem:[%s230] ss:$8 sm:$0xf]
  %v616 = vperm.slane %v614, 0
  %v617 = vperm.slane %v614, 1
  %v618 = vperm.slane %v614, 2
  %v619 = vperm.slane %v614, 3
  %v624 = vmul.f32 %v612, %v616
  %v625 = vmul.f32 %v611, %v617
  %v626 = vmul.f32 %v610, %v618
  %v627 = vmul.f32 %v613, %v619
  %628 = vst [vmem:[#allocation2 + $0xc0] sm:$0xff] %v624
  %629 = vst [vmem:[#allocation2 + $0xc8] sm:$0xff] %v625
  %630 = vst [vmem:[#allocation2 + $0xd0] sm:$0xff] %v626
  %631 = vst [vmem:[#allocation2 + $0xd8] sm:$0xff] %v627
  %632 = vrot.lane.b32.xlu0 %v442, 112
  %v633 = vpop.permute.xlu0 %632
  %634 = vrot.lane.b32.xlu0 %v443, 112
  %v635 = vpop.permute.xlu0 %634
  %636 = vrot.lane.b32.xlu0 %v444, 112
  %v637 = vpop.permute.xlu0 %636
  %638 = vrot.lane.b32.xlu0 %v445, 112
  %v639 = vpop.permute.xlu0 %638
  %v640 = vsel %vm257, %v637, %v639
  %v641 = vsel %vm257, %v635, %v637
  %v642 = vsel %vm257, %v633, %v635
  %v643 = vsel %vm257, %v639, %v633
  %v644 = vld [vmem:[%s262] ss:$8 sm:$0xf]
  %v646 = vperm.slane %v644, 0
  %v647 = vperm.slane %v644, 1
  %v648 = vperm.slane %v644, 2
  %v649 = vperm.slane %v644, 3
  %v654 = vmul.f32 %v642, %v646
  %v655 = vmul.f32 %v641, %v647
  %v656 = vmul.f32 %v640, %v648
  %v657 = vmul.f32 %v643, %v649
  %658 = vst [vmem:[#allocation2 + $0xe0] sm:$0xff] %v654
  %659 = vst [vmem:[#allocation2 + $0xe8] sm:$0xff] %v655
  %660 = vst [vmem:[#allocation2 + $0xf0] sm:$0xff] %v656
  %661 = vst [vmem:[#allocation2 + $0xf8] sm:$0xff] %v657
  %662 = vrot.lane.b32.xlu0 %v442, 111
  %v663 = vpop.permute.xlu0 %662
  %664 = vrot.lane.b32.xlu0 %v443, 111
  %v665 = vpop.permute.xlu0 %664
  %666 = vrot.lane.b32.xlu0 %v444, 111
  %v667 = vpop.permute.xlu0 %666
  %668 = vrot.lane.b32.xlu0 %v445, 111
  %v669 = vpop.permute.xlu0 %668
  %v670 = vsel %vm289, %v667, %v669
  %v671 = vsel %vm289, %v665, %v667
  %v672 = vsel %vm289, %v663, %v665
  %v673 = vsel %vm289, %v669, %v663
  %v674 = vld [vmem:[%s294] ss:$8 sm:$0xf]
  %v676 = vperm.slane %v674, 0
  %v677 = vperm.slane %v674, 1
  %v678 = vperm.slane %v674, 2
  %v679 = vperm.slane %v674, 3
  %v684 = vmul.f32 %v672, %v676
  %v685 = vmul.f32 %v671, %v677
  %v686 = vmul.f32 %v670, %v678
  %v687 = vmul.f32 %v673, %v679
  %688 = vst [vmem:[#allocation2 + $0x100] sm:$0xff] %v684
  %689 = vst [vmem:[#allocation2 + $0x108] sm:$0xff] %v685
  %690 = vst [vmem:[#allocation2 + $0x110] sm:$0xff] %v686
  %691 = vst [vmem:[#allocation2 + $0x118] sm:$0xff] %v687
  %v692 = vld [vmem:[#allocation2] sm:$0xff]
  %v693 = vld [vmem:[#allocation2 + $0x8] sm:$0xff]
  %v694 = vld [vmem:[#allocation2 + $0x10] sm:$0xff]
  %v695 = vld [vmem:[#allocation2 + $0x18] sm:$0xff]
  %v696 = vld [vmem:[#allocation2 + $0x20] sm:$0xff]
  %v697 = vld [vmem:[#allocation2 + $0x28] sm:$0xff]
  %v698 = vld [vmem:[#allocation2 + $0x30] sm:$0xff]
  %v699 = vld [vmem:[#allocation2 + $0x38] sm:$0xff]
  %v700 = vld [vmem:[#allocation2 + $0x40] sm:$0xff]
  %v701 = vld [vmem:[#allocation2 + $0x48] sm:$0xff]
  %v702 = vld [vmem:[#allocation2 + $0x50] sm:$0xff]
  %v703 = vld [vmem:[#allocation2 + $0x58] sm:$0xff]
  %v704 = vld [vmem:[#allocation2 + $0x60] sm:$0xff]
  %v705 = vld [vmem:[#allocation2 + $0x68] sm:$0xff]
  %v706 = vld [vmem:[#allocation2 + $0x70] sm:$0xff]
  %v707 = vld [vmem:[#allocation2 + $0x78] sm:$0xff]
  %v708 = vld [vmem:[#allocation2 + $0x80] sm:$0xff]
  %v709 = vld [vmem:[#allocation2 + $0x88] sm:$0xff]
  %v710 = vld [vmem:[#allocation2 + $0x90] sm:$0xff]
  %v711 = vld [vmem:[#allocation2 + $0x98] sm:$0xff]
  %v712 = vld [vmem:[#allocation2 + $0xa0] sm:$0xff]
  %v713 = vld [vmem:[#allocation2 + $0xa8] sm:$0xff]
  %v714 = vld [vmem:[#allocation2 + $0xb0] sm:$0xff]
  %v715 = vld [vmem:[#allocation2 + $0xb8] sm:$0xff]
  %v716 = vld [vmem:[#allocation2 + $0xc0] sm:$0xff]
  %v717 = vld [vmem:[#allocation2 + $0xc8] sm:$0xff]
  %v718 = vld [vmem:[#allocation2 + $0xd0] sm:$0xff]
  %v719 = vld [vmem:[#allocation2 + $0xd8] sm:$0xff]
  %v720 = vld [vmem:[#allocation2 + $0xe0] sm:$0xff]
  %v721 = vld [vmem:[#allocation2 + $0xe8] sm:$0xff]
  %v722 = vld [vmem:[#allocation2 + $0xf0] sm:$0xff]
  %v723 = vld [vmem:[#allocation2 + $0xf8] sm:$0xff]
  %v724 = vld [vmem:[#allocation2 + $0x100] sm:$0xff]
  %v725 = vld [vmem:[#allocation2 + $0x108] sm:$0xff]
  %v726 = vld [vmem:[#allocation2 + $0x110] sm:$0xff]
  %v727 = vld [vmem:[#allocation2 + $0x118] sm:$0xff]
  %v728 = vpack.c.bf16 %v696, %v692
  %v729 = vpack.c.bf16 %v697, %v693
  %v730 = vpack.c.bf16 %v698, %v694
  %v731 = vpack.c.bf16 %v699, %v695
  %v732 = vpack.c.bf16 %v704, %v700
  %v733 = vpack.c.bf16 %v705, %v701
  %v734 = vpack.c.bf16 %v706, %v702
  %v735 = vpack.c.bf16 %v707, %v703
  %v736 = vpack.c.bf16 %v712, %v708
  %v737 = vpack.c.bf16 %v713, %v709
  %v738 = vpack.c.bf16 %v714, %v710
  %v739 = vpack.c.bf16 %v715, %v711
  %v740 = vpack.c.bf16 %v720, %v716
  %v741 = vpack.c.bf16 %v721, %v717
  %v742 = vpack.c.bf16 %v722, %v718
  %v743 = vpack.c.bf16 %v723, %v719
  %v744 = vpack.c.bf16 %v724, %v724
  %v745 = vpack.c.bf16 %v725, %v725
  %v746 = vpack.c.bf16 %v726, %v726
  %v747 = vpack.c.bf16 %v727, %v727
  %749 = vset.pattern.permute.xlu0 0
  %750 = vperm.xlu0 %749, %v447
  %v751 = vpop.permute.xlu0 %750
  %v754 = vsel %vm374, %v446, 0
  %v757 = vsel %vm45, %v744, 0
  %v760 = vsel %vm45, %v745, 0
  %v763 = vsel %vm45, %v746, 0
  %v766 = vsel %vm45, %v747, 0
  %768 = vmatpush.bf16.msra.mxu0 0
  %769 = vmatpush.bf16.msra.mxu0 0
  %770 = vmatpush.bf16.msra.mxu0 0
  %771 = vmatpush.bf16.msra.mxu0 %v757
  %772 = vmatpush.bf16.msra.mxu0 %v740
  %773 = vmatpush.bf16.msra.mxu0 %v736
  %774 = vmatpush.bf16.msra.mxu0 %v732
  %775 = vmatpush.bf16.msra.mxu0 %v728
  %776 = vmatmul.bf16.gmra.mxu0 %v754
  %v777 = vpop.f32.mrf.mxu0
  %v778 = vadd.f32 %v751, %v777
  %v779 = vpop.f32.mrf.mxu0
  %780 = vdwg.mxu0
  %781 = vmatpush.bf16.msra.mxu0 0
  %782 = vmatpush.bf16.msra.mxu0 0
  %783 = vmatpush.bf16.msra.mxu0 0
  %784 = vmatpush.bf16.msra.mxu0 %v760
  %785 = vmatpush.bf16.msra.mxu0 %v741
  %786 = vmatpush.bf16.msra.mxu0 %v737
  %787 = vmatpush.bf16.msra.mxu0 %v733
  %788 = vmatpush.bf16.msra.mxu0 %v729
  %789 = vmatmul.bf16.gmra.mxu0 %v754
  %v790 = vpop.f32.mrf.mxu0
  %v791 = vadd.f32 %v751, %v790
  %v792 = vpop.f32.mrf.mxu0
  %793 = vdwg.mxu0
  %794 = vmatpush.bf16.msra.mxu0 0
  %795 = vmatpush.bf16.msra.mxu0 0
  %796 = vmatpush.bf16.msra.mxu0 0
  %797 = vmatpush.bf16.msra.mxu0 %v763
  %798 = vmatpush.bf16.msra.mxu0 %v742
  %799 = vmatpush.bf16.msra.mxu0 %v738
  %800 = vmatpush.bf16.msra.mxu0 %v734
  %801 = vmatpush.bf16.msra.mxu0 %v730
  %802 = vmatmul.bf16.gmra.mxu0 %v754
  %v803 = vpop.f32.mrf.mxu0
  %v804 = vadd.f32 %v751, %v803
  %v805 = vpop.f32.mrf.mxu0
  %806 = vdwg.mxu0
  %807 = vmatpush.bf16.msra.mxu0 0
  %808 = vmatpush.bf16.msra.mxu0 0
  %809 = vmatpush.bf16.msra.mxu0 0
  %810 = vmatpush.bf16.msra.mxu0 %v766
  %811 = vmatpush.bf16.msra.mxu0 %v743
  %812 = vmatpush.bf16.msra.mxu0 %v739
  %813 = vmatpush.bf16.msra.mxu0 %v735
  %814 = vmatpush.bf16.msra.mxu0 %v731
  %815 = vmatmul.bf16.gmra.mxu0 %v754
  %v816 = vpop.f32.mrf.mxu0
  %v817 = vadd.f32 %v751, %v816
  %v818 = vpop.f32.mrf.mxu0
  %819 = vdwg.mxu0
  %v820 = vmax.f32 %v778, 0.0
  %v821 = vmax.f32 %v791, 0.0
  %v822 = vmax.f32 %v804, 0.0
  %v823 = vmax.f32 %v817, 0.0
  %824 = vst [vmem:[#allocation2] sm:$0xff] %v820
  %825 = vst [vmem:[#allocation2 + $0x8] sm:$0xff] %v821
  %826 = vst [vmem:[#allocation2 + $0x10] sm:$0xff] %v822
  %827 = vst [vmem:[#allocation2 + $0x18] sm:$0xff] %v823
  %828 = vrot.lane.b32.xlu0 %v820, 127
  %v829 = vpop.permute.xlu0 %828
  %830 = vrot.lane.b32.xlu0 %v821, 127
  %v831 = vpop.permute.xlu0 %830
  %832 = vrot.lane.b32.xlu0 %v822, 127
  %v833 = vpop.permute.xlu0 %832
  %834 = vrot.lane.b32.xlu0 %v823, 127
  %v835 = vpop.permute.xlu0 %834
  %v836 = vsel %vm193, %v833, %v835
  %v837 = vsel %vm193, %v831, %v833
  %v838 = vsel %vm193, %v829, %v831
  %v839 = vsel %vm193, %v835, %v829
  %v840 = vld [vmem:[%s198] ss:$8 sm:$0xf]
  %v842 = vperm.slane %v840, 0
  %v843 = vperm.slane %v840, 1
  %v844 = vperm.slane %v840, 2
  %v845 = vperm.slane %v840, 3
  %v850 = vmul.f32 %v838, %v842
  %v851 = vmul.f32 %v837, %v843
  %v852 = vmul.f32 %v836, %v844
  %v853 = vmul.f32 %v839, %v845
  %854 = vst [vmem:[#allocation2 + $0x20] sm:$0xff] %v850
  %855 = vst [vmem:[#allocation2 + $0x28] sm:$0xff] %v851
  %856 = vst [vmem:[#allocation2 + $0x30] sm:$0xff] %v852
  %857 = vst [vmem:[#allocation2 + $0x38] sm:$0xff] %v853
  %858 = vrot.lane.b32.xlu0 %v820, 112
  %v859 = vpop.permute.xlu0 %858
  %860 = vrot.lane.b32.xlu0 %v821, 112
  %v861 = vpop.permute.xlu0 %860
  %862 = vrot.lane.b32.xlu0 %v822, 112
  %v863 = vpop.permute.xlu0 %862
  %864 = vrot.lane.b32.xlu0 %v823, 112
  %v865 = vpop.permute.xlu0 %864
  %v866 = vsel %vm257, %v863, %v865
  %v867 = vsel %vm257, %v861, %v863
  %v868 = vsel %vm257, %v859, %v861
  %v869 = vsel %vm257, %v865, %v859
  %v870 = vld [vmem:[%s262] ss:$8 sm:$0xf]
  %v872 = vperm.slane %v870, 0
  %v873 = vperm.slane %v870, 1
  %v874 = vperm.slane %v870, 2
  %v875 = vperm.slane %v870, 3
  %v880 = vmul.f32 %v868, %v872
  %v881 = vmul.f32 %v867, %v873
  %v882 = vmul.f32 %v866, %v874
  %v883 = vmul.f32 %v869, %v875
  %884 = vst [vmem:[#allocation2 + $0x40] sm:$0xff] %v880
  %885 = vst [vmem:[#allocation2 + $0x48] sm:$0xff] %v881
  %886 = vst [vmem:[#allocation2 + $0x50] sm:$0xff] %v882
  %887 = vst [vmem:[#allocation2 + $0x58] sm:$0xff] %v883
  %888 = vrot.lane.b32.xlu0 %v820, 111
  %v889 = vpop.permute.xlu0 %888
  %890 = vrot.lane.b32.xlu0 %v821, 111
  %v891 = vpop.permute.xlu0 %890
  %892 = vrot.lane.b32.xlu0 %v822, 111
  %v893 = vpop.permute.xlu0 %892
  %894 = vrot.lane.b32.xlu0 %v823, 111
  %v895 = vpop.permute.xlu0 %894
  %v896 = vsel %vm289, %v893, %v895
  %v897 = vsel %vm289, %v891, %v893
  %v898 = vsel %vm289, %v889, %v891
  %v899 = vsel %vm289, %v895, %v889
  %v900 = vld [vmem:[%s294] ss:$8 sm:$0xf]
  %v902 = vperm.slane %v900, 0
  %v903 = vperm.slane %v900, 1
  %v904 = vperm.slane %v900, 2
  %v905 = vperm.slane %v900, 3
  %v910 = vmul.f32 %v898, %v902
  %v911 = vmul.f32 %v897, %v903
  %v912 = vmul.f32 %v896, %v904
  %v913 = vmul.f32 %v899, %v905
  %914 = vst [vmem:[#allocation2 + $0x60] sm:$0xff] %v910
  %915 = vst [vmem:[#allocation2 + $0x68] sm:$0xff] %v911
  %916 = vst [vmem:[#allocation2 + $0x70] sm:$0xff] %v912
  %917 = vst [vmem:[#allocation2 + $0x78] sm:$0xff] %v913
  %v918 = vld [vmem:[#allocation2] sm:$0xff]
  %v919 = vld [vmem:[#allocation2 + $0x8] sm:$0xff]
  %v920 = vld [vmem:[#allocation2 + $0x10] sm:$0xff]
  %v921 = vld [vmem:[#allocation2 + $0x18] sm:$0xff]
  %v922 = vld [vmem:[#allocation2 + $0x20] sm:$0xff]
  %v923 = vld [vmem:[#allocation2 + $0x28] sm:$0xff]
  %v924 = vld [vmem:[#allocation2 + $0x30] sm:$0xff]
  %v925 = vld [vmem:[#allocation2 + $0x38] sm:$0xff]
  %v926 = vld [vmem:[#allocation2 + $0x40] sm:$0xff]
  %v927 = vld [vmem:[#allocation2 + $0x48] sm:$0xff]
  %v928 = vld [vmem:[#allocation2 + $0x50] sm:$0xff]
  %v929 = vld [vmem:[#allocation2 + $0x58] sm:$0xff]
  %v930 = vld [vmem:[#allocation2 + $0x60] sm:$0xff]
  %v931 = vld [vmem:[#allocation2 + $0x68] sm:$0xff]
  %v932 = vld [vmem:[#allocation2 + $0x70] sm:$0xff]
  %v933 = vld [vmem:[#allocation2 + $0x78] sm:$0xff]
  %v934 = vpack.c.bf16 %v922, %v918
  %v935 = vpack.c.bf16 %v923, %v919
  %v936 = vpack.c.bf16 %v924, %v920
  %v937 = vpack.c.bf16 %v925, %v921
  %v938 = vpack.c.bf16 %v930, %v926
  %v939 = vpack.c.bf16 %v931, %v927
  %v940 = vpack.c.bf16 %v932, %v928
  %v941 = vpack.c.bf16 %v933, %v929
  %v942 = vld [vmem:[%s6] sm:$0xf]
  %v943 = vld [vmem:[%s6 + $0x4] sm:$0xf]
  %v944 = vld [vmem:[%s7] sm:$0xff]
  %v945 = vld [vmem:[%s7 + $0x8] sm:$0xff]
  %947 = vset.pattern.permute.xlu0 0
  %948 = vperm.xlu0 %947, %v944
  %v949 = vpop.permute.xlu0 %948
  %952 = vset.pattern.permute.xlu0 0
  %953 = vperm.xlu0 %952, %v945
  %v954 = vpop.permute.xlu0 %953
  %v958 = vunpack.c.l.b16 %v942
  %v959 = vunpack.c.l.b16 %v943
  %v960 = vpack.c.b16 %v959, %v958
  %vm961 = vcmask 261120
  %v963 = vsel %vm961, %v960, 0
  %965 = vmatpush.bf16.msra.mxu0 0
  %966 = vmatpush.bf16.msra.mxu0 0
  %967 = vmatpush.bf16.msra.mxu0 0
  %968 = vmatpush.bf16.msra.mxu0 0
  %969 = vmatpush.bf16.msra.mxu0 0
  %970 = vmatpush.bf16.msra.mxu0 0
  %971 = vmatpush.bf16.msra.mxu0 %v938
  %972 = vmatpush.bf16.msra.mxu0 %v934
  %973 = vmatmul.bf16.gmra.mxu0 %v963
  %v974 = vpop.f32.mrf.mxu0
  %v975 = vadd.f32 %v949, %v974
  %v976 = vpop.f32.mrf.mxu0
  %v977 = vadd.f32 %v954, %v976
  %978 = vdwg.mxu0
  %979 = vmatpush.bf16.msra.mxu0 0
  %980 = vmatpush.bf16.msra.mxu0 0
  %981 = vmatpush.bf16.msra.mxu0 0
  %982 = vmatpush.bf16.msra.mxu0 0
  %983 = vmatpush.bf16.msra.mxu0 0
  %984 = vmatpush.bf16.msra.mxu0 0
  %985 = vmatpush.bf16.msra.mxu0 %v939
  %986 = vmatpush.bf16.msra.mxu0 %v935
  %987 = vmatmul.bf16.gmra.mxu0 %v963
  %v988 = vpop.f32.mrf.mxu0
  %v989 = vadd.f32 %v949, %v988
  %v990 = vpop.f32.mrf.mxu0
  %v991 = vadd.f32 %v954, %v990
  %992 = vdwg.mxu0
  %993 = vmatpush.bf16.msra.mxu0 0
  %994 = vmatpush.bf16.msra.mxu0 0
  %995 = vmatpush.bf16.msra.mxu0 0
  %996 = vmatpush.bf16.msra.mxu0 0
  %997 = vmatpush.bf16.msra.mxu0 0
  %998 = vmatpush.bf16.msra.mxu0 0
  %999 = vmatpush.bf16.msra.mxu0 %v940
  %1000 = vmatpush.bf16.msra.mxu0 %v936
  %1001 = vmatmul.bf16.gmra.mxu0 %v963
  %v1002 = vpop.f32.mrf.mxu0
  %v1003 = vadd.f32 %v949, %v1002
  %v1004 = vpop.f32.mrf.mxu0
  %v1005 = vadd.f32 %v954, %v1004
  %1006 = vdwg.mxu0
  %1007 = vmatpush.bf16.msra.mxu0 0
  %1008 = vmatpush.bf16.msra.mxu0 0
  %1009 = vmatpush.bf16.msra.mxu0 0
  %1010 = vmatpush.bf16.msra.mxu0 0
  %1011 = vmatpush.bf16.msra.mxu0 0
  %1012 = vmatpush.bf16.msra.mxu0 0
  %1013 = vmatpush.bf16.msra.mxu0 %v941
  %1014 = vmatpush.bf16.msra.mxu0 %v937
  %1015 = vmatmul.bf16.gmra.mxu0 %v963
  %v1016 = vpop.f32.mrf.mxu0
  %v1017 = vadd.f32 %v949, %v1016
  %v1018 = vpop.f32.mrf.mxu0
  %v1019 = vadd.f32 %v954, %v1018
  %1020 = vdwg.mxu0
  %v1021 = vmax.f32 %v975, 0.0
  %v1022 = vmax.f32 %v989, 0.0
  %v1023 = vmax.f32 %v1003, 0.0
  %v1024 = vmax.f32 %v1017, 0.0
  %v1025 = vmax.f32 %v977, 0.0
  %v1026 = vmax.f32 %v991, 0.0
  %v1027 = vmax.f32 %v1005, 0.0
  %v1028 = vmax.f32 %v1019, 0.0
  %1029 = vst [vmem:[%s8] sm:$0xff] %v1021
  %1030 = vst [vmem:[%s8 + $0x8] sm:$0xff] %v1022
  %1031 = vst [vmem:[%s8 + $0x10] sm:$0xff] %v1023
  %1032 = vst [vmem:[%s8 + $0x18] sm:$0xff] %v1024
  %1033 = vst [vmem:[%s8 + $0x20] sm:$0xff] %v1025
  %1034 = vst [vmem:[%s8 + $0x28] sm:$0xff] %v1026
  %1035 = vst [vmem:[%s8 + $0x30] sm:$0xff] %v1027
  %1036 = vst [vmem:[%s8 + $0x38] sm:$0xff] %v1028
  // Predicated region
  $region34: #{upsample_layer_forward.1} parent=0 // pred_check
    _
  $region35: #{upsample_layer_forward.1} parent=0 // pred_check_branch
    %1038 = sbr.rel (0) target = $region37
  $region36: #{upsample_layer_forward.1} parent=0 // pred_region
    _
  $region37: #{upsample_layer_forward.1} parent=0 // pred_fallthru
    _
  // Predicated region
  $region38: #{upsample_layer_forward.1} parent=0 // pred_check
    _
  $region39: #{upsample_layer_forward.1} parent=0 // pred_check_branch
    %1040 = sbr.rel (0) target = $region41
  $region40: #{upsample_layer_forward.1} parent=0 // pred_region
    _
  $region41: #{upsample_layer_forward.1} parent=0 // pred_fallthru
    _

</llo_original>
